<compile_context>
chip_gen: v7x
topology: tpu7x:2x2x1
jax: 0.10.0
libtpu: 0.0.40
codegen_flags: <defaults>
</compile_context>

<pallas_src>
import functools

import jax
import jax.numpy as jnp
from jax.experimental import pallas as pl
from jax.experimental.pallas import tpu as pltpu


def _wattention_kernel(x_ref, w1_ref, w2_ref, o_ref, max_ref, sum_ref,
                       *, tile_h, inv_h):
    # x_ref : (1, C, tile_h, W)  current H-chunk of one batch element (NCHW)
    # w1_ref: (Cr, C), w2_ref: (C, Cr)
    # o_ref : (1, C, W)
    # max_ref / sum_ref: (C, W) f32 running-pool accumulators (VMEM scratch)
    h_step = pl.program_id(1)

    @pl.when(h_step == 0)
    def _init():
        max_ref[...] = jnp.full_like(max_ref, -jnp.inf)
        sum_ref[...] = jnp.zeros_like(sum_ref)

    # Single pass over the streamed tile: each H-row is read once and folded
    # into the running max and running sum (pure VPU elementwise work).
    m = max_ref[...]
    s = sum_ref[...]
    for i in range(tile_h):                                # small static trip count
        row = x_ref[0, :, i, :].astype(jnp.float32)        # (C, W)
        m = jnp.maximum(m, row)
        s = s + row
    max_ref[...] = m
    sum_ref[...] = s

    @pl.when(h_step == pl.num_programs(1) - 1)
    def _finalize():
        m_max = max_ref[...]
        m_avg = sum_ref[...] * inv_h
        w1 = w1_ref[...].astype(jnp.float32)
        w2 = w2_ref[...].astype(jnp.float32)
        # SE branches share w1: two small dots instead of a lane-axis
        # concat + slice (SE FLOPs are negligible either way).
        h1 = jnp.maximum(
            jnp.dot(w1, m_max, preferred_element_type=jnp.float32), 0.0)
        h2 = jnp.maximum(
            jnp.dot(w1, m_avg, preferred_element_type=jnp.float32), 0.0)
        att = jax.nn.sigmoid(
            jnp.dot(w2, h1 + h2, preferred_element_type=jnp.float32))
        o_ref[0, :, :] = att.astype(o_ref.dtype)


def _pick_tile_h(H, C, W, budget_bytes=4 << 20):
    """H-chunk size: a multiple of 8 (f32 sublane tile) dividing H, else full H.

    Prefer >=4, else >=2, reduction steps per batch element so BlockSpec
    double-buffering gets DMA/compute overlap, while keeping the
    double-buffered streamed block (lane dim pads to 128 when W < 128) within
    a conservative VMEM budget (v7x has only 64 MiB physical VMEM).
    """
    padded_w = ((max(W, 1) + 127) // 128) * 128
    block_bytes = lambda t: 2 * C * t * padded_w * 4        # 2 = double buffer
    divs = [t for t in range(8, H, 8)
            if H % t == 0 and block_bytes(t) <= budget_bytes]
    for min_steps in (4, 2):
        cands = [t for t in divs if H // t >= min_steps]
        if cands:
            return max(cands)
    return H                                                # full-H block is always legal


@jax.jit
def wattention(x, w1, w2):
    """x: (B, C, H, W); w1: (Cr, C); w2: (C, Cr). Returns (B, C, 1, W)."""
    B, C, H, W = x.shape
    Cr = w1.shape[0]

    tile_h = _pick_tile_h(H, C, W)
    n_h = H // tile_h

    itemsize = jnp.dtype(x.dtype).itemsize
    cost = pl.CostEstimate(
        flops=(2 * B * C * H * W               # running max + running sum
               + 2 * (2 * B * Cr * C * W)      # two first 1x1 convs (shared w1)
               + 2 * B * C * Cr * W),          # second 1x1 conv
        transcendentals=B * C * W,             # sigmoid
        bytes_accessed=(B * C * H * W * itemsize
                        + (Cr * C + C * Cr) * 4
                        + B * C * W * itemsize))

    out = pl.pallas_call(
        functools.partial(_wattention_kernel, tile_h=tile_h, inv_h=1.0 / H),
        out_shape=jax.ShapeDtypeStruct((B, C, W), x.dtype),
        grid_spec=pltpu.PrefetchScalarGridSpec(
            num_scalar_prefetch=0,
            grid=(B, n_h),                               # reduction (H) axis last
            in_specs=[
                pl.BlockSpec((1, C, tile_h, W), lambda b, h: (b, 0, h, 0)),
                pl.BlockSpec((Cr, C), lambda b, h: (0, 0)),
                pl.BlockSpec((C, Cr), lambda b, h: (0, 0)),
            ],
            out_specs=pl.BlockSpec((1, C, W), lambda b, h: (b, 0, 0)),
            scratch_shapes=[pltpu.VMEM((C, W), jnp.float32),
                            pltpu.VMEM((C, W), jnp.float32)]),
        compiler_params=pltpu.CompilerParams(
            dimension_semantics=("parallel", "arbitrary"),
            vmem_limit_bytes=32 * 1024 * 1024),
        cost_estimate=cost,
    )(x, w1, w2)

    # (B, C, W) -> (B, C, 1, W), matching AdaptiveXPool2d((1, None)) output.
    return out[:, :, None, :]


def _ref_wattention(x, w1, w2):
    """Pure-JAX reference mirroring the PyTorch WAttention forward (NCHW)."""
    m_max = jnp.max(x, axis=2, keepdims=True)              # (B, C, 1, W)
    m_avg = jnp.mean(x, axis=2, keepdims=True)

    def se(m):
        h = jnp.maximum(jnp.einsum('rc,bcow->brow', w1, m), 0.0)
        return jnp.einsum('cr,brow->bcow', w2, h)

    return jax.nn.sigmoid(se(m_max) + se(m_avg))           # (B, C, 1, W)


if __name__ == "__main__":
    B, C, H, W = 2, 64, 16, 16
    reduction = 16
    Cr = C // reduction

    key = jax.random.PRNGKey(0)
    kx, k1, k2 = jax.random.split(key, 3)

    x = jax.random.normal(kx, (B, C, H, W), jnp.float32)
    # Conv2d(C, C//r, 1, bias=False) / Conv2d(C//r, C, 1, bias=False) weights.
    w1 = jax.random.normal(k1, (Cr, C), jnp.float32) * 0.1
    w2 = jax.random.normal(k2, (C, Cr), jnp.float32) * 0.1

    out = jax.block_until_ready(wattention(x, w1, w2))
    ref = _ref_wattention(x, w1, w2)

    if out.shape != (B, C, 1, W):
        raise AssertionError(f"bad output shape {out.shape}")
    if not jnp.allclose(out, ref, atol=2e-3, rtol=2e-3):
        err = float(jnp.max(jnp.abs(out - ref)))
        raise AssertionError(f"Pallas kernel does not match reference (max err {err})")
    print("KERNEL_OK")
</pallas_src>

<mosaic_0001>
module attributes {stable_mosaic.version = 11 : i64} {
  func.func @_wattention_kernel(%arg0: i32, %arg1: i32, %arg2: memref<1x64x8x16xf32, #tpu.memory_space<vmem>>, %arg3: memref<4x64xf32, #tpu.memory_space<vmem>>, %arg4: memref<64x4xf32, #tpu.memory_space<vmem>>, %arg5: memref<1x64x16xf32, #tpu.memory_space<vmem>>, %arg6: memref<64x16xf32, #tpu.memory_space<vmem>>, %arg7: memref<64x16xf32, #tpu.memory_space<vmem>>) attributes {dimension_semantics = [#tpu.dimension_semantics<parallel>, #tpu.dimension_semantics<arbitrary>], iteration_bounds = array<i64: 2, 2>, scalar_prefetch = 0 : i64, scratch_operands = 2 : i64, tpu.core_type = #tpu.core_type<tc>, window_params = [{transform_indices = @transform_0, window_bounds = array<i64: 1, 64, 8, 16>}, {pipeline_mode = #tpu.pipeline_mode<synchronous>, transform_indices = @transform_1, window_bounds = array<i64: 4, 64>}, {pipeline_mode = #tpu.pipeline_mode<synchronous>, transform_indices = @transform_2, window_bounds = array<i64: 64, 4>}, {transform_indices = @transform_3, window_bounds = array<i64: 1, 64, 16>}]} {
    %c0_i32 = arith.constant 0 : i32
    %0 = arith.cmpi eq, %arg1, %c0_i32 : i32
    %1 = arith.extui %0 : i1 to i32
    %c0_i32_0 = arith.constant 0 : i32
    %2 = arith.cmpi ne, %1, %c0_i32_0 : i32
    scf.if %2 {
      %cst = arith.constant 0xFF800000 : f32
      %42 = vector.broadcast %cst : f32 to vector<64x16xf32>
      %c0_34 = arith.constant 0 : index
      %c0_35 = arith.constant 0 : index
      %43 = vector.load %arg6[%c0_34, %c0_35] : memref<64x16xf32, #tpu.memory_space<vmem>>, vector<64x16xf32>
      tpu.vector_store %arg6[%c0_34, %c0_35], %42 {strides = array<i32>} : memref<64x16xf32, #tpu.memory_space<vmem>>, vector<64x16xf32>,
      %cst_36 = arith.constant 0.000000e+00 : f32
      %44 = vector.broadcast %cst_36 : f32 to vector<64x16xf32>
      %c0_37 = arith.constant 0 : index
      %c0_38 = arith.constant 0 : index
      %45 = vector.load %arg7[%c0_37, %c0_38] : memref<64x16xf32, #tpu.memory_space<vmem>>, vector<64x16xf32>
      tpu.vector_store %arg7[%c0_37, %c0_38], %44 {strides = array<i32>} : memref<64x16xf32, #tpu.memory_space<vmem>>, vector<64x16xf32>,
    } else {
    }
    %c0 = arith.constant 0 : index
    %c0_1 = arith.constant 0 : index
    %3 = vector.load %arg6[%c0, %c0_1] : memref<64x16xf32, #tpu.memory_space<vmem>>, vector<64x16xf32>
    %c0_2 = arith.constant 0 : index
    %c0_3 = arith.constant 0 : index
    %4 = vector.load %arg7[%c0_2, %c0_3] : memref<64x16xf32, #tpu.memory_space<vmem>>, vector<64x16xf32>
    %c0_4 = arith.constant 0 : index
    %c0_5 = arith.constant 0 : index
    %c0_6 = arith.constant 0 : index
    %c0_7 = arith.constant 0 : index
    %5 = vector.load %arg2[%c0_4, %c0_5, %c0_6, %c0_7] : memref<1x64x8x16xf32, #tpu.memory_space<vmem>>, vector<1x64x1x16xf32>
    %6 = vector.shape_cast %5 : vector<1x64x1x16xf32> to vector<64x16xf32>
    %7 = arith.maximumf %3, %6 : vector<64x16xf32>
    %8 = arith.addf %4, %6 : vector<64x16xf32>
    %c0_8 = arith.constant 0 : index
    %c0_9 = arith.constant 0 : index
    %c1 = arith.constant 1 : index
    %c0_10 = arith.constant 0 : index
    %9 = vector.load %arg2[%c0_8, %c0_9, %c1, %c0_10] : memref<1x64x8x16xf32, #tpu.memory_space<vmem>>, vector<1x64x1x16xf32>
    %10 = vector.shape_cast %9 : vector<1x64x1x16xf32> to vector<64x16xf32>
    %11 = arith.maximumf %7, %10 : vector<64x16xf32>
    %12 = arith.addf %8, %10 : vector<64x16xf32>
    %c0_11 = arith.constant 0 : index
    %c0_12 = arith.constant 0 : index
    %c2 = arith.constant 2 : index
    %c0_13 = arith.constant 0 : index
    %13 = vector.load %arg2[%c0_11, %c0_12, %c2, %c0_13] : memref<1x64x8x16xf32, #tpu.memory_space<vmem>>, vector<1x64x1x16xf32>
    %14 = vector.shape_cast %13 : vector<1x64x1x16xf32> to vector<64x16xf32>
    %15 = arith.maximumf %11, %14 : vector<64x16xf32>
    %16 = arith.addf %12, %14 : vector<64x16xf32>
    %c0_14 = arith.constant 0 : index
    %c0_15 = arith.constant 0 : index
    %c3 = arith.constant 3 : index
    %c0_16 = arith.constant 0 : index
    %17 = vector.load %arg2[%c0_14, %c0_15, %c3, %c0_16] : memref<1x64x8x16xf32, #tpu.memory_space<vmem>>, vector<1x64x1x16xf32>
    %18 = vector.shape_cast %17 : vector<1x64x1x16xf32> to vector<64x16xf32>
    %19 = arith.maximumf %15, %18 : vector<64x16xf32>
    %20 = arith.addf %16, %18 : vector<64x16xf32>
    %c0_17 = arith.constant 0 : index
    %c0_18 = arith.constant 0 : index
    %c4 = arith.constant 4 : index
    %c0_19 = arith.constant 0 : index
    %21 = vector.load %arg2[%c0_17, %c0_18, %c4, %c0_19] : memref<1x64x8x16xf32, #tpu.memory_space<vmem>>, vector<1x64x1x16xf32>
    %22 = vector.shape_cast %21 : vector<1x64x1x16xf32> to vector<64x16xf32>
    %23 = arith.maximumf %19, %22 : vector<64x16xf32>
    %24 = arith.addf %20, %22 : vector<64x16xf32>
    %c0_20 = arith.constant 0 : index
    %c0_21 = arith.constant 0 : index
    %c5 = arith.constant 5 : index
    %c0_22 = arith.constant 0 : index
    %25 = vector.load %arg2[%c0_20, %c0_21, %c5, %c0_22] : memref<1x64x8x16xf32, #tpu.memory_space<vmem>>, vector<1x64x1x16xf32>
    %26 = vector.shape_cast %25 : vector<1x64x1x16xf32> to vector<64x16xf32>
    %27 = arith.maximumf %23, %26 : vector<64x16xf32>
    %28 = arith.addf %24, %26 : vector<64x16xf32>
    %c0_23 = arith.constant 0 : index
    %c0_24 = arith.constant 0 : index
    %c6 = arith.constant 6 : index
    %c0_25 = arith.constant 0 : index
    %29 = vector.load %arg2[%c0_23, %c0_24, %c6, %c0_25] : memref<1x64x8x16xf32, #tpu.memory_space<vmem>>, vector<1x64x1x16xf32>
    %30 = vector.shape_cast %29 : vector<1x64x1x16xf32> to vector<64x16xf32>
    %31 = arith.maximumf %27, %30 : vector<64x16xf32>
    %32 = arith.addf %28, %30 : vector<64x16xf32>
    %c0_26 = arith.constant 0 : index
    %c0_27 = arith.constant 0 : index
    %c7 = arith.constant 7 : index
    %c0_28 = arith.constant 0 : index
    %33 = vector.load %arg2[%c0_26, %c0_27, %c7, %c0_28] : memref<1x64x8x16xf32, #tpu.memory_space<vmem>>, vector<1x64x1x16xf32>
    %34 = vector.shape_cast %33 : vector<1x64x1x16xf32> to vector<64x16xf32>
    %35 = arith.maximumf %31, %34 : vector<64x16xf32>
    %36 = arith.addf %32, %34 : vector<64x16xf32>
    %c0_29 = arith.constant 0 : index
    %c0_30 = arith.constant 0 : index
    %37 = vector.load %arg6[%c0_29, %c0_30] : memref<64x16xf32, #tpu.memory_space<vmem>>, vector<64x16xf32>
    tpu.vector_store %arg6[%c0_29, %c0_30], %35 {strides = array<i32>} : memref<64x16xf32, #tpu.memory_space<vmem>>, vector<64x16xf32>,
    %c0_31 = arith.constant 0 : index
    %c0_32 = arith.constant 0 : index
    %38 = vector.load %arg7[%c0_31, %c0_32] : memref<64x16xf32, #tpu.memory_space<vmem>>, vector<64x16xf32>
    tpu.vector_store %arg7[%c0_31, %c0_32], %36 {strides = array<i32>} : memref<64x16xf32, #tpu.memory_space<vmem>>, vector<64x16xf32>,
    %c1_i32 = arith.constant 1 : i32
    %39 = arith.cmpi eq, %arg1, %c1_i32 : i32
    %40 = arith.extui %39 : i1 to i32
    %c0_i32_33 = arith.constant 0 : i32
    %41 = arith.cmpi ne, %40, %c0_i32_33 : i32
    scf.if %41 {
      %c0_34 = arith.constant 0 : index
      %c0_35 = arith.constant 0 : index
      %42 = vector.load %arg6[%c0_34, %c0_35] : memref<64x16xf32, #tpu.memory_space<vmem>>, vector<64x16xf32>
      %c0_36 = arith.constant 0 : index
      %c0_37 = arith.constant 0 : index
      %43 = vector.load %arg7[%c0_36, %c0_37] : memref<64x16xf32, #tpu.memory_space<vmem>>, vector<64x16xf32>
      %cst = arith.constant 6.250000e-02 : f32
      %44 = vector.broadcast %cst : f32 to vector<64x16xf32>
      %45 = arith.mulf %43, %44 : vector<64x16xf32>
      %c0_38 = arith.constant 0 : index
      %c0_39 = arith.constant 0 : index
      %46 = vector.load %arg3[%c0_38, %c0_39] : memref<4x64xf32, #tpu.memory_space<vmem>>, vector<4x64xf32>
      %c0_40 = arith.constant 0 : index
      %c0_41 = arith.constant 0 : index
      %47 = vector.load %arg4[%c0_40, %c0_41] : memref<64x4xf32, #tpu.memory_space<vmem>>, vector<64x4xf32>
      %cst_42 = arith.constant dense<0.000000e+00> : vector<4x16xf32>
      %48 = tpu.matmul %46, %42, %cst_42 {dimension_numbers = #tpu.dot_dimension_numbers<[1], [0], [0], [1], [0, 0, 1, 1], [], []>} : vector<4x64xf32>, vector<64x16xf32>, vector<4x16xf32> -> vector<4x16xf32>
      %cst_43 = arith.constant 0.000000e+00 : f32
      %49 = vector.broadcast %cst_43 : f32 to vector<4x16xf32>
      %50 = arith.maximumf %48, %49 : vector<4x16xf32>
      %cst_44 = arith.constant dense<0.000000e+00> : vector<4x16xf32>
      %51 = tpu.matmul %46, %45, %cst_44 {dimension_numbers = #tpu.dot_dimension_numbers<[1], [0], [0], [1], [0, 0, 1, 1], [], []>} : vector<4x64xf32>, vector<64x16xf32>, vector<4x16xf32> -> vector<4x16xf32>
      %cst_45 = arith.constant 0.000000e+00 : f32
      %52 = vector.broadcast %cst_45 : f32 to vector<4x16xf32>
      %53 = arith.maximumf %51, %52 : vector<4x16xf32>
      %54 = arith.addf %50, %53 : vector<4x16xf32>
      %cst_46 = arith.constant dense<0.000000e+00> : vector<64x16xf32>
      %55 = tpu.matmul %47, %54, %cst_46 {dimension_numbers = #tpu.dot_dimension_numbers<[1], [0], [0], [1], [0, 0, 1, 1], [], []>} : vector<64x4xf32>, vector<4x16xf32>, vector<64x16xf32> -> vector<64x16xf32>
      %56 = arith.negf %55 : vector<64x16xf32>
      %57 = math.exp %56 : vector<64x16xf32>
      %cst_47 = arith.constant 1.000000e+00 : f32
      %58 = vector.broadcast %cst_47 : f32 to vector<64x16xf32>
      %59 = arith.addf %58, %57 : vector<64x16xf32>
      %60 = arith.divf %58, %59 : vector<64x16xf32>
      %c0_48 = arith.constant 0 : index
      %c0_49 = arith.constant 0 : index
      %c0_50 = arith.constant 0 : index
      %61 = vector.load %arg5[%c0_48, %c0_49, %c0_50] : memref<1x64x16xf32, #tpu.memory_space<vmem>>, vector<1x64x16xf32>
      %62 = vector.shape_cast %61 : vector<1x64x16xf32> to vector<64x16xf32>
      %63 = vector.shape_cast %60 : vector<64x16xf32> to vector<1x64x16xf32>
      tpu.vector_store %arg5[%c0_48, %c0_49, %c0_50], %63 {strides = array<i32>} : memref<1x64x16xf32, #tpu.memory_space<vmem>>, vector<1x64x16xf32>,
    } else {
    }
    return
  }
  func.func @transform_0(%arg0: i32, %arg1: i32) -> (i32, i32, i32, i32) {
    %c0_i32 = arith.constant 0 : i32
    %c0_i32_0 = arith.constant 0 : i32
    %c0_i32_1 = arith.constant 0 : i32
    return %arg0, %c0_i32, %arg1, %c0_i32_0 : i32, i32, i32, i32
  }
  func.func @transform_1(%arg0: i32, %arg1: i32) -> (i32, i32) {
    %c0_i32 = arith.constant 0 : i32
    %c0_i32_0 = arith.constant 0 : i32
    %c0_i32_1 = arith.constant 0 : i32
    return %c0_i32, %c0_i32_0 : i32, i32
  }
  func.func @transform_2(%arg0: i32, %arg1: i32) -> (i32, i32) {
    %c0_i32 = arith.constant 0 : i32
    %c0_i32_0 = arith.constant 0 : i32
    %c0_i32_1 = arith.constant 0 : i32
    return %c0_i32, %c0_i32_0 : i32, i32
  }
  func.func @transform_3(%arg0: i32, %arg1: i32) -> (i32, i32, i32) {
    %c0_i32 = arith.constant 0 : i32
    %c0_i32_0 = arith.constant 0 : i32
    %c0_i32_1 = arith.constant 0 : i32
    return %arg0, %c0_i32, %c0_i32_0 : i32, i32, i32
  }
}

</mosaic_0001>

<llo_original>
// kernel: wattention.1
$region0: #{wattention.1}
  #allocation0 [shape = 'u32[]', space=smem, size = 0x4, offset = 0x4, fixed_abs, tag = 'smem constant byte address 0x4 - core index']
  #allocation1 [shape = 'u32[144,128]{1,0:T(1,128)}', space=vmem, size = 0x12000, scoped, tag = 'internal scratch']
  #allocation2 [shape = 'f32[64,16]{1,0:T(8,128)}', space=vmem, size = 0x8000, scoped, tag = 'scratch operand']
  #allocation3 [shape = 'f32[64,16]{1,0:T(8,128)}', space=vmem, size = 0x8000, scoped, tag = 'scratch operand']
  %s0 = inlined_call_operand.vmem [shape: f32[2,64,16,16], index: 0, kind: input, shape index: {}]
  %s1 = inlined_call_operand.vmem [shape: f32[4,64], index: 1, kind: input, shape index: {}]
  %s2 = inlined_call_operand.vmem [shape: f32[64,4], index: 2, kind: input, shape index: {}]
  %s3 = inlined_call_operand.vmem [shape: f32[2,64,16], index: 3, kind: output, shape index: {}]
  %s4 = sld [smem:[#allocation0]]
  $region91: #{wattention.1} parent=0
    _
  %s6 = ssub.s32 1, %s4
  %s7 = scalar_select 0, %s6, %s4
  $region1: #{wattention.1} parent=0
    #allocation4 [shape = 'u8[524288]{0}', space=vmem, size = 0x80000, scoped, tag = 'input window, operand 0']
    loop: start=0, step=1, limit=6
    $region2: #{wattention.1} parent=1 // loop_pre_header
      _
    $region3: #{wattention.1} parent=1 // loop_header
      %s9 = sphi 0, %s13
      %p10 = scmp.ge.s32.totalorder %s9, 6
      %s16 = sphi 0, %s28
      %s17 = sphi 0, %s24
      %s18 = sphi 0, %s16
      %s19 = sphi 0, %s17
      %s20 = sphi 0, %s18
      %s21 = sphi 0, %s19
      %s33 = sphi 0, %s35
      %s36 = sphi 0, %s33
      %s37 = sphi 0, %s36
      %s53 = sphi 0, %s37
      %s57 = sphi 0, %s57
      %s59 = sphi 0, %s57
      %s60 = sphi 0, %s59
      %s74 = sphi 0, %s60
      %s78 = sphi 0, %s78
      %s80 = sphi 0, %s78
      %s81 = sphi 0, %s80
      %s95 = sphi 0, %s81
      %s101 = sphi 0, %s103
      %s104 = sphi 0, %s101
      %s105 = sphi 0, %s104
      %s121 = sphi 0, %s105
    $region4: #{wattention.1} parent=1 // loop_header_branch
      %12 = sbr.rel (%p10) target = $region8
    $region5: #{wattention.1} parent=1 // loop_body
      %s14 = ssub.s32 %s9, 1
      %s15 = ssub.s32 %s9, 2
      %s22 = sadd.s32 1, %s17
      %p23 = scmp.ge.s32.totalorder %s22, 2
      %s24 = scalar_select %p23, 0, %s22
      %s25 = sadd.s32 1, %s16
      %s26 = scalar_select %p23, %s25, %s16
      %p27 = scmp.ge.s32.totalorder %s26, 2
      %s28 = scalar_select %p27, 0, %s26
      %s29 = ssub.s32 %s16, %s28
      %s30 = ssub.s32 %s17, %s24
      %s31 = sor.u32 %s29, %s30
      %p32 = scmp.eq.s32.totalorder %s31, 0
      %s34 = sadd.s32 %s33, 1
      %s35 = scalar_select %p32, %s33, %s34
      %p38 = pneg %p32
      %p39 = scmp.eq.s32.totalorder %s9, 3
      %p40 = por %p38, %p39
      %p41 = scmp.ne.s32.totalorder %s33, %s36
      %p42 = scmp.eq.s32.totalorder %s9, 0
      %p43 = por %p41, %p42
      %p44 = scmp.ne.s32.totalorder %s33, %s36
      %p45 = scmp.eq.s32.totalorder %s14, 3
      %p46 = por %p44, %p45
      %p47 = scmp.ne.s32.totalorder %s36, %s37
      %p48 = scmp.eq.s32.totalorder %s14, 0
      %p49 = por %p47, %p48
      %p50 = scmp.ne.s32.totalorder %s36, %s37
      %p51 = scmp.eq.s32.totalorder %s15, 3
      %p52 = por %p50, %p51
      %p54 = scmp.ne.s32.totalorder %s37, %s53
      %p55 = scmp.eq.s32.totalorder %s15, 0
      %p56 = por %p54, %p55
      %s58 = sadd.s32 %s57, 1
      %p61 = scmp.eq.s32.totalorder %s9, 3
      %p62 = scmp.ne.s32.totalorder %s57, %s59
      %p63 = scmp.eq.s32.totalorder %s9, 0
      %p64 = por %p62, %p63
      %p65 = scmp.ne.s32.totalorder %s57, %s59
      %p66 = scmp.eq.s32.totalorder %s14, 3
      %p67 = por %p65, %p66
      %p68 = scmp.ne.s32.totalorder %s59, %s60
      %p69 = scmp.eq.s32.totalorder %s14, 0
      %p70 = por %p68, %p69
      %p71 = scmp.ne.s32.totalorder %s59, %s60
      %p72 = scmp.eq.s32.totalorder %s15, 3
      %p73 = por %p71, %p72
      %p75 = scmp.ne.s32.totalorder %s60, %s74
      %p76 = scmp.eq.s32.totalorder %s15, 0
      %p77 = por %p75, %p76
      %s79 = sadd.s32 %s78, 1
      %p82 = scmp.eq.s32.totalorder %s9, 3
      %p83 = scmp.ne.s32.totalorder %s78, %s80
      %p84 = scmp.eq.s32.totalorder %s9, 0
      %p85 = por %p83, %p84
      %p86 = scmp.ne.s32.totalorder %s78, %s80
      %p87 = scmp.eq.s32.totalorder %s14, 3
      %p88 = por %p86, %p87
      %p89 = scmp.ne.s32.totalorder %s80, %s81
      %p90 = scmp.eq.s32.totalorder %s14, 0
      %p91 = por %p89, %p90
      %p92 = scmp.ne.s32.totalorder %s80, %s81
      %p93 = scmp.eq.s32.totalorder %s15, 3
      %p94 = por %p92, %p93
      %p96 = scmp.ne.s32.totalorder %s81, %s95
      %p97 = scmp.eq.s32.totalorder %s15, 0
      %p98 = por %p96, %p97
      %s99 = ssub.s32 %s16, %s28
      %p100 = scmp.eq.s32.totalorder %s99, 0
      %s102 = sadd.s32 %s101, 1
      %s103 = scalar_select %p100, %s101, %s102
      %p106 = pneg %p100
      %p107 = scmp.eq.s32.totalorder %s9, 3
      %p108 = por %p106, %p107
      %p109 = scmp.ne.s32.totalorder %s101, %s104
      %p110 = scmp.eq.s32.totalorder %s9, 0
      %p111 = por %p109, %p110
      %p112 = scmp.ne.s32.totalorder %s101, %s104
      %p113 = scmp.eq.s32.totalorder %s14, 3
      %p114 = por %p112, %p113
      %p115 = scmp.ne.s32.totalorder %s104, %s105
      %p116 = scmp.eq.s32.totalorder %s14, 0
      %p117 = por %p115, %p116
      %p118 = scmp.ne.s32.totalorder %s104, %s105
      %p119 = scmp.eq.s32.totalorder %s15, 3
      %p120 = por %p118, %p119
      %p122 = scmp.ne.s32.totalorder %s105, %s121
      %p123 = scmp.eq.s32.totalorder %s15, 0
      %p124 = por %p122, %p123
      %p125 = scmp.le.s32.totalorder 1, %s9
      %p126 = scmp.lt.s32.totalorder %s9, 5
      %p127 = pnand %p125, %p126
      %p128 = pneg %p127
      // Predicated region
      $region9: #{wattention.1} parent=5 // pred_check
        _
      $region10: #{wattention.1} parent=5 // pred_check_branch
        %130 = sbr.rel (%p127) target = $region12
      $region11: #{wattention.1} parent=5 // pred_region
        %s131 = ssub.s32 %s9, 1
        // Predicated region
        $region13: #{wattention.1} parent=11 // pred_check
          %p132 = pneg %p70
        $region14: #{wattention.1} parent=11 // pred_check_branch
          %134 = sbr.rel (%p132) target = $region16
        $region15: #{wattention.1} parent=11 // pred_region
          _
        $region16: #{wattention.1} parent=11 // pred_fallthru
          _
        // Predicated region
        $region17: #{wattention.1} parent=11 // pred_check
          %p135 = pneg %p91
        $region18: #{wattention.1} parent=11 // pred_check_branch
          %137 = sbr.rel (%p135) target = $region20
        $region19: #{wattention.1} parent=11 // pred_region
          _
        $region20: #{wattention.1} parent=11 // pred_fallthru
          _
      $region12: #{wattention.1} parent=5 // pred_fallthru
        _
      %p138 = scmp.lt.s32.totalorder %s9, 4
      // Predicated region
      $region21: #{wattention.1} parent=5 // pred_check
        %p139 = pneg %p138
      $region22: #{wattention.1} parent=5 // pred_check_branch
        %141 = sbr.rel (%p139) target = $region24
      $region23: #{wattention.1} parent=5 // pred_region
        // Predicated region
        $region25: #{wattention.1} parent=23 // pred_check
          %p142 = pneg %p43
        $region26: #{wattention.1} parent=23 // pred_check_branch
          %144 = sbr.rel (%p142) target = $region28
        $region27: #{wattention.1} parent=23 // pred_region
          %s145 = sand.u32 %s33, 1
          %s146 = sand.u32 %s33, 1
          %s147 = smul.addr %s146, 512
          %s148 = scalar_lea.vmem [#allocation4], %s147
          %s149 = smul.addr %s16, 128
          %s150 = sadd.s32 %s17, %s149
          %s151 = smul.addr %s150, 8
          %s152 = scalar_lea.vmem %s0, %s151
          // Predicated region
          $region29: #{wattention.1} parent=27 // pred_check
            _
          $region30: #{wattention.1} parent=27 // pred_check_branch
            %154 = sbr.rel (0) target = $region32
          $region31: #{wattention.1} parent=27 // pred_region
            // Predicated region
            $region33: #{wattention.1} parent=31 // pred_check
              _
            $region34: #{wattention.1} parent=31 // pred_check_branch
              %156 = sbr.rel (0) target = $region36
            $region35: #{wattention.1} parent=31 // pred_region
              // Predicated region
              $region48: #{wattention.1} parent=35 // pred_check
                _
              $region49: #{wattention.1} parent=35 // pred_check_branch
                %297 = sbr.rel (0) target = $region51
              $region50: #{wattention.1} parent=35 // pred_region
                loop: start=0, step=1, limit=1
                $region52: #{wattention.1} parent=50 // loop_pre_header
                  _
                $region53: #{wattention.1} parent=50 // loop_header
                  %s299 = sphi 0, %s303
                  %p300 = scmp.ge.s32.totalorder %s299, 1
                  %s304 = sphi %s152, %s152
                  %s305 = sphi %s148, %s148
                $region54: #{wattention.1} parent=50 // loop_header_branch
                  %302 = sbr.rel (%p300) target = $region58
                $region55: #{wattention.1} parent=50 // loop_body
                  %v306 = vld [vmem:[%s304] sm:$0xff]
                  %307 = vst [vmem:[%s305] sm:$0xff] %v306
                  %v308 = vld [vmem:[%s304 + $0x10] sm:$0xff]
                  %309 = vst [vmem:[%s305 + $0x8] sm:$0xff] %v308
                  %v310 = vld [vmem:[%s304 + $0x20] sm:$0xff]
                  %311 = vst [vmem:[%s305 + $0x10] sm:$0xff] %v310
                  %v312 = vld [vmem:[%s304 + $0x30] sm:$0xff]
                  %313 = vst [vmem:[%s305 + $0x18] sm:$0xff] %v312
                  %v314 = vld [vmem:[%s304 + $0x40] sm:$0xff]
                  %315 = vst [vmem:[%s305 + $0x20] sm:$0xff] %v314
                  %v316 = vld [vmem:[%s304 + $0x50] sm:$0xff]
                  %317 = vst [vmem:[%s305 + $0x28] sm:$0xff] %v316
                  %v318 = vld [vmem:[%s304 + $0x60] sm:$0xff]
                  %319 = vst [vmem:[%s305 + $0x30] sm:$0xff] %v318
                  %v320 = vld [vmem:[%s304 + $0x70] sm:$0xff]
                  %321 = vst [vmem:[%s305 + $0x38] sm:$0xff] %v320
                  %v322 = vld [vmem:[%s304 + $0x80] sm:$0xff]
                  %323 = vst [vmem:[%s305 + $0x40] sm:$0xff] %v322
                  %v324 = vld [vmem:[%s304 + $0x90] sm:$0xff]
                  %325 = vst [vmem:[%s305 + $0x48] sm:$0xff] %v324
                  %v326 = vld [vmem:[%s304 + $0xa0] sm:$0xff]
                  %327 = vst [vmem:[%s305 + $0x50] sm:$0xff] %v326
                  %v328 = vld [vmem:[%s304 + $0xb0] sm:$0xff]
                  %329 = vst [vmem:[%s305 + $0x58] sm:$0xff] %v328
                  %v330 = vld [vmem:[%s304 + $0xc0] sm:$0xff]
                  %331 = vst [vmem:[%s305 + $0x60] sm:$0xff] %v330
                  %v332 = vld [vmem:[%s304 + $0xd0] sm:$0xff]
                  %333 = vst [vmem:[%s305 + $0x68] sm:$0xff] %v332
                  %v334 = vld [vmem:[%s304 + $0xe0] sm:$0xff]
                  %335 = vst [vmem:[%s305 + $0x70] sm:$0xff] %v334
                  %v336 = vld [vmem:[%s304 + $0xf0] sm:$0xff]
                  %337 = vst [vmem:[%s305 + $0x78] sm:$0xff] %v336
                  %v338 = vld [vmem:[%s304 + $0x100] sm:$0xff]
                  %339 = vst [vmem:[%s305 + $0x80] sm:$0xff] %v338
                  %v340 = vld [vmem:[%s304 + $0x110] sm:$0xff]
                  %341 = vst [vmem:[%s305 + $0x88] sm:$0xff] %v340
                  %v342 = vld [vmem:[%s304 + $0x120] sm:$0xff]
                  %343 = vst [vmem:[%s305 + $0x90] sm:$0xff] %v342
                  %v344 = vld [vmem:[%s304 + $0x130] sm:$0xff]
                  %345 = vst [vmem:[%s305 + $0x98] sm:$0xff] %v344
                  %v346 = vld [vmem:[%s304 + $0x140] sm:$0xff]
                  %347 = vst [vmem:[%s305 + $0xa0] sm:$0xff] %v346
                  %v348 = vld [vmem:[%s304 + $0x150] sm:$0xff]
                  %349 = vst [vmem:[%s305 + $0xa8] sm:$0xff] %v348
                  %v350 = vld [vmem:[%s304 + $0x160] sm:$0xff]
                  %351 = vst [vmem:[%s305 + $0xb0] sm:$0xff] %v350
                  %v352 = vld [vmem:[%s304 + $0x170] sm:$0xff]
                  %353 = vst [vmem:[%s305 + $0xb8] sm:$0xff] %v352
                  %v354 = vld [vmem:[%s304 + $0x180] sm:$0xff]
                  %355 = vst [vmem:[%s305 + $0xc0] sm:$0xff] %v354
                  %v356 = vld [vmem:[%s304 + $0x190] sm:$0xff]
                  %357 = vst [vmem:[%s305 + $0xc8] sm:$0xff] %v356
                  %v358 = vld [vmem:[%s304 + $0x1a0] sm:$0xff]
                  %359 = vst [vmem:[%s305 + $0xd0] sm:$0xff] %v358
                  %v360 = vld [vmem:[%s304 + $0x1b0] sm:$0xff]
                  %361 = vst [vmem:[%s305 + $0xd8] sm:$0xff] %v360
                  %v362 = vld [vmem:[%s304 + $0x1c0] sm:$0xff]
                  %363 = vst [vmem:[%s305 + $0xe0] sm:$0xff] %v362
                  %v364 = vld [vmem:[%s304 + $0x1d0] sm:$0xff]
                  %365 = vst [vmem:[%s305 + $0xe8] sm:$0xff] %v364
                  %v366 = vld [vmem:[%s304 + $0x1e0] sm:$0xff]
                  %367 = vst [vmem:[%s305 + $0xf0] sm:$0xff] %v366
                  %v368 = vld [vmem:[%s304 + $0x1f0] sm:$0xff]
                  %369 = vst [vmem:[%s305 + $0xf8] sm:$0xff] %v368
                  %v370 = vld [vmem:[%s304 + $0x200] sm:$0xff]
                  %371 = vst [vmem:[%s305 + $0x100] sm:$0xff] %v370
                  %v372 = vld [vmem:[%s304 + $0x210] sm:$0xff]
                  %373 = vst [vmem:[%s305 + $0x108] sm:$0xff] %v372
                  %v374 = vld [vmem:[%s304 + $0x220] sm:$0xff]
                  %375 = vst [vmem:[%s305 + $0x110] sm:$0xff] %v374
                  %v376 = vld [vmem:[%s304 + $0x230] sm:$0xff]
                  %377 = vst [vmem:[%s305 + $0x118] sm:$0xff] %v376
                  %v378 = vld [vmem:[%s304 + $0x240] sm:$0xff]
                  %379 = vst [vmem:[%s305 + $0x120] sm:$0xff] %v378
                  %v380 = vld [vmem:[%s304 + $0x250] sm:$0xff]
                  %381 = vst [vmem:[%s305 + $0x128] sm:$0xff] %v380
                  %v382 = vld [vmem:[%s304 + $0x260] sm:$0xff]
                  %383 = vst [vmem:[%s305 + $0x130] sm:$0xff] %v382
                  %v384 = vld [vmem:[%s304 + $0x270] sm:$0xff]
                  %385 = vst [vmem:[%s305 + $0x138] sm:$0xff] %v384
                  %v386 = vld [vmem:[%s304 + $0x280] sm:$0xff]
                  %387 = vst [vmem:[%s305 + $0x140] sm:$0xff] %v386
                  %v388 = vld [vmem:[%s304 + $0x290] sm:$0xff]
                  %389 = vst [vmem:[%s305 + $0x148] sm:$0xff] %v388
                  %v390 = vld [vmem:[%s304 + $0x2a0] sm:$0xff]
                  %391 = vst [vmem:[%s305 + $0x150] sm:$0xff] %v390
                  %v392 = vld [vmem:[%s304 + $0x2b0] sm:$0xff]
                  %393 = vst [vmem:[%s305 + $0x158] sm:$0xff] %v392
                  %v394 = vld [vmem:[%s304 + $0x2c0] sm:$0xff]
                  %395 = vst [vmem:[%s305 + $0x160] sm:$0xff] %v394
                  %v396 = vld [vmem:[%s304 + $0x2d0] sm:$0xff]
                  %397 = vst [vmem:[%s305 + $0x168] sm:$0xff] %v396
                  %v398 = vld [vmem:[%s304 + $0x2e0] sm:$0xff]
                  %399 = vst [vmem:[%s305 + $0x170] sm:$0xff] %v398
                  %v400 = vld [vmem:[%s304 + $0x2f0] sm:$0xff]
                  %401 = vst [vmem:[%s305 + $0x178] sm:$0xff] %v400
                  %v402 = vld [vmem:[%s304 + $0x300] sm:$0xff]
                  %403 = vst [vmem:[%s305 + $0x180] sm:$0xff] %v402
                  %v404 = vld [vmem:[%s304 + $0x310] sm:$0xff]
                  %405 = vst [vmem:[%s305 + $0x188] sm:$0xff] %v404
                  %v406 = vld [vmem:[%s304 + $0x320] sm:$0xff]
                  %407 = vst [vmem:[%s305 + $0x190] sm:$0xff] %v406
                  %v408 = vld [vmem:[%s304 + $0x330] sm:$0xff]
                  %409 = vst [vmem:[%s305 + $0x198] sm:$0xff] %v408
                  %v410 = vld [vmem:[%s304 + $0x340] sm:$0xff]
                  %411 = vst [vmem:[%s305 + $0x1a0] sm:$0xff] %v410
                  %v412 = vld [vmem:[%s304 + $0x350] sm:$0xff]
                  %413 = vst [vmem:[%s305 + $0x1a8] sm:$0xff] %v412
                  %v414 = vld [vmem:[%s304 + $0x360] sm:$0xff]
                  %415 = vst [vmem:[%s305 + $0x1b0] sm:$0xff] %v414
                  %v416 = vld [vmem:[%s304 + $0x370] sm:$0xff]
                  %417 = vst [vmem:[%s305 + $0x1b8] sm:$0xff] %v416
                  %v418 = vld [vmem:[%s304 + $0x380] sm:$0xff]
                  %419 = vst [vmem:[%s305 + $0x1c0] sm:$0xff] %v418
                  %v420 = vld [vmem:[%s304 + $0x390] sm:$0xff]
                  %421 = vst [vmem:[%s305 + $0x1c8] sm:$0xff] %v420
                  %v422 = vld [vmem:[%s304 + $0x3a0] sm:$0xff]
                  %423 = vst [vmem:[%s305 + $0x1d0] sm:$0xff] %v422
                  %v424 = vld [vmem:[%s304 + $0x3b0] sm:$0xff]
                  %425 = vst [vmem:[%s305 + $0x1d8] sm:$0xff] %v424
                  %v426 = vld [vmem:[%s304 + $0x3c0] sm:$0xff]
                  %427 = vst [vmem:[%s305 + $0x1e0] sm:$0xff] %v426
                  %v428 = vld [vmem:[%s304 + $0x3d0] sm:$0xff]
                  %429 = vst [vmem:[%s305 + $0x1e8] sm:$0xff] %v428
                  %v430 = vld [vmem:[%s304 + $0x3e0] sm:$0xff]
                  %431 = vst [vmem:[%s305 + $0x1f0] sm:$0xff] %v430
                  %v432 = vld [vmem:[%s304 + $0x3f0] sm:$0xff]
                  %433 = vst [vmem:[%s305 + $0x1f8] sm:$0xff] %v432
                $region56: #{wattention.1} parent=50 // loop_footer
                  %s303 = sadd.s32 1, %s299
                $region57: #{wattention.1} parent=50 // loop_footer_branch
                  %298 = sbr.rel target = $region53
                $region58: #{wattention.1} parent=50 // loop_exit
                  _
              $region51: #{wattention.1} parent=35 // pred_fallthru
                _
              // Predicated region
              $region59: #{wattention.1} parent=35 // pred_check
                _
              $region60: #{wattention.1} parent=35 // pred_check_branch
                %435 = sbr.rel target = $region62
              $region61: #{wattention.1} parent=35 // pred_region
                _
              $region62: #{wattention.1} parent=35 // pred_fallthru
                _
            $region36: #{wattention.1} parent=31 // pred_fallthru
              _
            // Predicated region
            $region37: #{wattention.1} parent=31 // pred_check
              _
            $region38: #{wattention.1} parent=31 // pred_check_branch
              %158 = sbr.rel target = $region40
            $region39: #{wattention.1} parent=31 // pred_region
              loop: start=0, step=1, limit=1
              $region41: #{wattention.1} parent=39 // loop_pre_header
                _
              $region42: #{wattention.1} parent=39 // loop_header
                %s161 = sphi 0, %s165
                %p162 = scmp.ge.s32.totalorder %s161, 1
                %s166 = sphi %s152, %s152
                %s167 = sphi %s148, %s148
              $region43: #{wattention.1} parent=39 // loop_header_branch
                %164 = sbr.rel (%p162) target = $region47
              $region44: #{wattention.1} parent=39 // loop_body
                %v168 = vld [vmem:[%s166] sm:$0xff]
                %169 = vst [vmem:[%s167] sm:$0xff] %v168
                %v170 = vld [vmem:[%s166 + $0x10] sm:$0xff]
                %171 = vst [vmem:[%s167 + $0x8] sm:$0xff] %v170
                %v172 = vld [vmem:[%s166 + $0x20] sm:$0xff]
                %173 = vst [vmem:[%s167 + $0x10] sm:$0xff] %v172
                %v174 = vld [vmem:[%s166 + $0x30] sm:$0xff]
                %175 = vst [vmem:[%s167 + $0x18] sm:$0xff] %v174
                %v176 = vld [vmem:[%s166 + $0x40] sm:$0xff]
                %177 = vst [vmem:[%s167 + $0x20] sm:$0xff] %v176
                %v178 = vld [vmem:[%s166 + $0x50] sm:$0xff]
                %179 = vst [vmem:[%s167 + $0x28] sm:$0xff] %v178
                %v180 = vld [vmem:[%s166 + $0x60] sm:$0xff]
                %181 = vst [vmem:[%s167 + $0x30] sm:$0xff] %v180
                %v182 = vld [vmem:[%s166 + $0x70] sm:$0xff]
                %183 = vst [vmem:[%s167 + $0x38] sm:$0xff] %v182
                %v184 = vld [vmem:[%s166 + $0x80] sm:$0xff]
                %185 = vst [vmem:[%s167 + $0x40] sm:$0xff] %v184
                %v186 = vld [vmem:[%s166 + $0x90] sm:$0xff]
                %187 = vst [vmem:[%s167 + $0x48] sm:$0xff] %v186
                %v188 = vld [vmem:[%s166 + $0xa0] sm:$0xff]
                %189 = vst [vmem:[%s167 + $0x50] sm:$0xff] %v188
                %v190 = vld [vmem:[%s166 + $0xb0] sm:$0xff]
                %191 = vst [vmem:[%s167 + $0x58] sm:$0xff] %v190
                %v192 = vld [vmem:[%s166 + $0xc0] sm:$0xff]
                %193 = vst [vmem:[%s167 + $0x60] sm:$0xff] %v192
                %v194 = vld [vmem:[%s166 + $0xd0] sm:$0xff]
                %195 = vst [vmem:[%s167 + $0x68] sm:$0xff] %v194
                %v196 = vld [vmem:[%s166 + $0xe0] sm:$0xff]
                %197 = vst [vmem:[%s167 + $0x70] sm:$0xff] %v196
                %v198 = vld [vmem:[%s166 + $0xf0] sm:$0xff]
                %199 = vst [vmem:[%s167 + $0x78] sm:$0xff] %v198
                %v200 = vld [vmem:[%s166 + $0x100] sm:$0xff]
                %201 = vst [vmem:[%s167 + $0x80] sm:$0xff] %v200
                %v202 = vld [vmem:[%s166 + $0x110] sm:$0xff]
                %203 = vst [vmem:[%s167 + $0x88] sm:$0xff] %v202
                %v204 = vld [vmem:[%s166 + $0x120] sm:$0xff]
                %205 = vst [vmem:[%s167 + $0x90] sm:$0xff] %v204
                %v206 = vld [vmem:[%s166 + $0x130] sm:$0xff]
                %207 = vst [vmem:[%s167 + $0x98] sm:$0xff] %v206
                %v208 = vld [vmem:[%s166 + $0x140] sm:$0xff]
                %209 = vst [vmem:[%s167 + $0xa0] sm:$0xff] %v208
                %v210 = vld [vmem:[%s166 + $0x150] sm:$0xff]
                %211 = vst [vmem:[%s167 + $0xa8] sm:$0xff] %v210
                %v212 = vld [vmem:[%s166 + $0x160] sm:$0xff]
                %213 = vst [vmem:[%s167 + $0xb0] sm:$0xff] %v212
                %v214 = vld [vmem:[%s166 + $0x170] sm:$0xff]
                %215 = vst [vmem:[%s167 + $0xb8] sm:$0xff] %v214
                %v216 = vld [vmem:[%s166 + $0x180] sm:$0xff]
                %217 = vst [vmem:[%s167 + $0xc0] sm:$0xff] %v216
                %v218 = vld [vmem:[%s166 + $0x190] sm:$0xff]
                %219 = vst [vmem:[%s167 + $0xc8] sm:$0xff] %v218
                %v220 = vld [vmem:[%s166 + $0x1a0] sm:$0xff]
                %221 = vst [vmem:[%s167 + $0xd0] sm:$0xff] %v220
                %v222 = vld [vmem:[%s166 + $0x1b0] sm:$0xff]
                %223 = vst [vmem:[%s167 + $0xd8] sm:$0xff] %v222
                %v224 = vld [vmem:[%s166 + $0x1c0] sm:$0xff]
                %225 = vst [vmem:[%s167 + $0xe0] sm:$0xff] %v224
                %v226 = vld [vmem:[%s166 + $0x1d0] sm:$0xff]
                %227 = vst [vmem:[%s167 + $0xe8] sm:$0xff] %v226
                %v228 = vld [vmem:[%s166 + $0x1e0] sm:$0xff]
                %229 = vst [vmem:[%s167 + $0xf0] sm:$0xff] %v228
                %v230 = vld [vmem:[%s166 + $0x1f0] sm:$0xff]
                %231 = vst [vmem:[%s167 + $0xf8] sm:$0xff] %v230
                %v232 = vld [vmem:[%s166 + $0x200] sm:$0xff]
                %233 = vst [vmem:[%s167 + $0x100] sm:$0xff] %v232
                %v234 = vld [vmem:[%s166 + $0x210] sm:$0xff]
                %235 = vst [vmem:[%s167 + $0x108] sm:$0xff] %v234
                %v236 = vld [vmem:[%s166 + $0x220] sm:$0xff]
                %237 = vst [vmem:[%s167 + $0x110] sm:$0xff] %v236
                %v238 = vld [vmem:[%s166 + $0x230] sm:$0xff]
                %239 = vst [vmem:[%s167 + $0x118] sm:$0xff] %v238
                %v240 = vld [vmem:[%s166 + $0x240] sm:$0xff]
                %241 = vst [vmem:[%s167 + $0x120] sm:$0xff] %v240
                %v242 = vld [vmem:[%s166 + $0x250] sm:$0xff]
                %243 = vst [vmem:[%s167 + $0x128] sm:$0xff] %v242
                %v244 = vld [vmem:[%s166 + $0x260] sm:$0xff]
                %245 = vst [vmem:[%s167 + $0x130] sm:$0xff] %v244
                %v246 = vld [vmem:[%s166 + $0x270] sm:$0xff]
                %247 = vst [vmem:[%s167 + $0x138] sm:$0xff] %v246
                %v248 = vld [vmem:[%s166 + $0x280] sm:$0xff]
                %249 = vst [vmem:[%s167 + $0x140] sm:$0xff] %v248
                %v250 = vld [vmem:[%s166 + $0x290] sm:$0xff]
                %251 = vst [vmem:[%s167 + $0x148] sm:$0xff] %v250
                %v252 = vld [vmem:[%s166 + $0x2a0] sm:$0xff]
                %253 = vst [vmem:[%s167 + $0x150] sm:$0xff] %v252
                %v254 = vld [vmem:[%s166 + $0x2b0] sm:$0xff]
                %255 = vst [vmem:[%s167 + $0x158] sm:$0xff] %v254
                %v256 = vld [vmem:[%s166 + $0x2c0] sm:$0xff]
                %257 = vst [vmem:[%s167 + $0x160] sm:$0xff] %v256
                %v258 = vld [vmem:[%s166 + $0x2d0] sm:$0xff]
                %259 = vst [vmem:[%s167 + $0x168] sm:$0xff] %v258
                %v260 = vld [vmem:[%s166 + $0x2e0] sm:$0xff]
                %261 = vst [vmem:[%s167 + $0x170] sm:$0xff] %v260
                %v262 = vld [vmem:[%s166 + $0x2f0] sm:$0xff]
                %263 = vst [vmem:[%s167 + $0x178] sm:$0xff] %v262
                %v264 = vld [vmem:[%s166 + $0x300] sm:$0xff]
                %265 = vst [vmem:[%s167 + $0x180] sm:$0xff] %v264
                %v266 = vld [vmem:[%s166 + $0x310] sm:$0xff]
                %267 = vst [vmem:[%s167 + $0x188] sm:$0xff] %v266
                %v268 = vld [vmem:[%s166 + $0x320] sm:$0xff]
                %269 = vst [vmem:[%s167 + $0x190] sm:$0xff] %v268
                %v270 = vld [vmem:[%s166 + $0x330] sm:$0xff]
                %271 = vst [vmem:[%s167 + $0x198] sm:$0xff] %v270
                %v272 = vld [vmem:[%s166 + $0x340] sm:$0xff]
                %273 = vst [vmem:[%s167 + $0x1a0] sm:$0xff] %v272
                %v274 = vld [vmem:[%s166 + $0x350] sm:$0xff]
                %275 = vst [vmem:[%s167 + $0x1a8] sm:$0xff] %v274
                %v276 = vld [vmem:[%s166 + $0x360] sm:$0xff]
                %277 = vst [vmem:[%s167 + $0x1b0] sm:$0xff] %v276
                %v278 = vld [vmem:[%s166 + $0x370] sm:$0xff]
                %279 = vst [vmem:[%s167 + $0x1b8] sm:$0xff] %v278
                %v280 = vld [vmem:[%s166 + $0x380] sm:$0xff]
                %281 = vst [vmem:[%s167 + $0x1c0] sm:$0xff] %v280
                %v282 = vld [vmem:[%s166 + $0x390] sm:$0xff]
                %283 = vst [vmem:[%s167 + $0x1c8] sm:$0xff] %v282
                %v284 = vld [vmem:[%s166 + $0x3a0] sm:$0xff]
                %285 = vst [vmem:[%s167 + $0x1d0] sm:$0xff] %v284
                %v286 = vld [vmem:[%s166 + $0x3b0] sm:$0xff]
                %287 = vst [vmem:[%s167 + $0x1d8] sm:$0xff] %v286
                %v288 = vld [vmem:[%s166 + $0x3c0] sm:$0xff]
                %289 = vst [vmem:[%s167 + $0x1e0] sm:$0xff] %v288
                %v290 = vld [vmem:[%s166 + $0x3d0] sm:$0xff]
                %291 = vst [vmem:[%s167 + $0x1e8] sm:$0xff] %v290
                %v292 = vld [vmem:[%s166 + $0x3e0] sm:$0xff]
                %293 = vst [vmem:[%s167 + $0x1f0] sm:$0xff] %v292
                %v294 = vld [vmem:[%s166 + $0x3f0] sm:$0xff]
                %295 = vst [vmem:[%s167 + $0x1f8] sm:$0xff] %v294
              $region45: #{wattention.1} parent=39 // loop_footer
                %s165 = sadd.s32 1, %s161
              $region46: #{wattention.1} parent=39 // loop_footer_branch
                %160 = sbr.rel target = $region42
              $region47: #{wattention.1} parent=39 // loop_exit
                _
            $region40: #{wattention.1} parent=31 // pred_fallthru
              _
          $region32: #{wattention.1} parent=27 // pred_fallthru
            _
          %436 = vnop
        $region28: #{wattention.1} parent=23 // pred_fallthru
          _
      $region24: #{wattention.1} parent=5 // pred_fallthru
        _
      %p437 = scmp.le.s32.totalorder 1, %s9
      %p438 = scmp.lt.s32.totalorder %s9, 5
      %p439 = pnand %p437, %p438
      %p440 = pneg %p439
      // Predicated region
      $region63: #{wattention.1} parent=5 // pred_check
        _
      $region64: #{wattention.1} parent=5 // pred_check_branch
        %442 = sbr.rel (%p439) target = $region66
      $region65: #{wattention.1} parent=5 // pred_region
        %s443 = ssub.s32 %s9, 1
        %s444 = sand.u32 %s36, 1
        %s445 = sand.u32 %s36, 1
        %s446 = smul.addr %s445, 512
        %s447 = scalar_lea.vmem [#allocation4], %s446
        // Predicated region
        $region67: #{wattention.1} parent=65 // pred_check
          %p448 = pneg %p49
        $region68: #{wattention.1} parent=65 // pred_check_branch
          %450 = sbr.rel (%p448) target = $region70
        $region69: #{wattention.1} parent=65 // pred_region
          _
        $region70: #{wattention.1} parent=65 // pred_fallthru
          _
        %s451 = sand.u32 %s36, 1
        %s452 = sand.u32 %s36, 1
        %s453 = smul.addr %s452, 512
        %s454 = scalar_lea.vmem [#allocation4], %s453
        %p455 = pneg %p49
        %p456 = pneg %p46
        %p457 = pneg %p70
        %p458 = pneg %p67
        %p459 = pneg %p91
        %p460 = pneg %p88
        %p461 = pneg %p117
        %p462 = pneg %p114
        %p463 = scmp.lt.s32.totalorder %s18, 1
        %s464 = scalar_select %p463, %s18, 1
        %s465 = smul.addr %s464, 8
        %s466 = smul.addr %s465, 8
        %s467 = scalar_lea.vmem %s3, %s466
        %p468 = scmp.lt.s32.totalorder %s18, 1
        %s469 = scalar_select %p468, %s18, 1
        %s470 = smul.addr %s469, 8
        %s471 = smul.addr %s470, 8
        %s472 = scalar_lea.vmem %s3, %s471
        %p473 = scmp.eq.s32.totalorder %s19, 0
        // Predicated region
        $region71: #{wattention.1} parent=65 // pred_check
          %p474 = pneg %p473
        $region72: #{wattention.1} parent=65 // pred_check_branch
          %476 = sbr.rel (%p474) target = $region74
        $region73: #{wattention.1} parent=65 // pred_region
          %vm477 = vcmask 130048
          %478 = vst.msk [vmem:[#allocation2] sm:$0xff] %vm477, -inf
          %479 = vst.msk [vmem:[#allocation2 + $0x8] sm:$0xff] %vm477, -inf
          %480 = vst.msk [vmem:[#allocation2 + $0x10] sm:$0xff] %vm477, -inf
          %481 = vst.msk [vmem:[#allocation2 + $0x18] sm:$0xff] %vm477, -inf
          %482 = vst.msk [vmem:[#allocation2 + $0x20] sm:$0xff] %vm477, -inf
          %483 = vst.msk [vmem:[#allocation2 + $0x28] sm:$0xff] %vm477, -inf
          %484 = vst.msk [vmem:[#allocation2 + $0x30] sm:$0xff] %vm477, -inf
          %485 = vst.msk [vmem:[#allocation2 + $0x38] sm:$0xff] %vm477, -inf
          %486 = vst.msk [vmem:[#allocation3] sm:$0xff] %vm477, 0.0
          %487 = vst.msk [vmem:[#allocation3 + $0x8] sm:$0xff] %vm477, 0.0
          %488 = vst.msk [vmem:[#allocation3 + $0x10] sm:$0xff] %vm477, 0.0
          %489 = vst.msk [vmem:[#allocation3 + $0x18] sm:$0xff] %vm477, 0.0
          %490 = vst.msk [vmem:[#allocation3 + $0x20] sm:$0xff] %vm477, 0.0
          %491 = vst.msk [vmem:[#allocation3 + $0x28] sm:$0xff] %vm477, 0.0
          %492 = vst.msk [vmem:[#allocation3 + $0x30] sm:$0xff] %vm477, 0.0
          %493 = vst.msk [vmem:[#allocation3 + $0x38] sm:$0xff] %vm477, 0.0
        $region74: #{wattention.1} parent=65 // pred_fallthru
          _
        %v494 = vld [vmem:[#allocation2] sm:$0xff]
        %v495 = vld [vmem:[#allocation2 + $0x8] sm:$0xff]
        %v496 = vld [vmem:[#allocation2 + $0x10] sm:$0xff]
        %v497 = vld [vmem:[#allocation2 + $0x18] sm:$0xff]
        %v498 = vld [vmem:[#allocation2 + $0x20] sm:$0xff]
        %v499 = vld [vmem:[#allocation2 + $0x28] sm:$0xff]
        %v500 = vld [vmem:[#allocation2 + $0x30] sm:$0xff]
        %v501 = vld [vmem:[#allocation2 + $0x38] sm:$0xff]
        %v502 = vld [vmem:[#allocation3] sm:$0xff]
        %v503 = vld [vmem:[#allocation3 + $0x8] sm:$0xff]
        %v504 = vld [vmem:[#allocation3 + $0x10] sm:$0xff]
        %v505 = vld [vmem:[#allocation3 + $0x18] sm:$0xff]
        %v506 = vld [vmem:[#allocation3 + $0x20] sm:$0xff]
        %v507 = vld [vmem:[#allocation3 + $0x28] sm:$0xff]
        %v508 = vld [vmem:[#allocation3 + $0x30] sm:$0xff]
        %v509 = vld [vmem:[#allocation3 + $0x38] sm:$0xff]
        %v510 = vld [vmem:[%s447] sm:$0x1]
        %v511 = vld [vmem:[%s447 + $0x8] sm:$0x1]
        %v512 = vld [vmem:[%s447 + $0x10] sm:$0x1]
        %v513 = vld [vmem:[%s447 + $0x18] sm:$0x1]
        %v514 = vld [vmem:[%s447 + $0x20] sm:$0x1]
        %v515 = vld [vmem:[%s447 + $0x28] sm:$0x1]
        %v516 = vld [vmem:[%s447 + $0x30] sm:$0x1]
        %v517 = vld [vmem:[%s447 + $0x38] sm:$0x1]
        %v518 = vld [vmem:[%s447 + $0x40] sm:$0x1]
        %v519 = vld [vmem:[%s447 + $0x48] sm:$0x1]
        %v520 = vld [vmem:[%s447 + $0x50] sm:$0x1]
        %v521 = vld [vmem:[%s447 + $0x58] sm:$0x1]
        %v522 = vld [vmem:[%s447 + $0x60] sm:$0x1]
        %v523 = vld [vmem:[%s447 + $0x68] sm:$0x1]
        %v524 = vld [vmem:[%s447 + $0x70] sm:$0x1]
        %v525 = vld [vmem:[%s447 + $0x78] sm:$0x1]
        %v526 = vld [vmem:[%s447 + $0x80] sm:$0x1]
        %v527 = vld [vmem:[%s447 + $0x88] sm:$0x1]
        %v528 = vld [vmem:[%s447 + $0x90] sm:$0x1]
        %v529 = vld [vmem:[%s447 + $0x98] sm:$0x1]
        %v530 = vld [vmem:[%s447 + $0xa0] sm:$0x1]
        %v531 = vld [vmem:[%s447 + $0xa8] sm:$0x1]
        %v532 = vld [vmem:[%s447 + $0xb0] sm:$0x1]
        %v533 = vld [vmem:[%s447 + $0xb8] sm:$0x1]
        %v534 = vld [vmem:[%s447 + $0xc0] sm:$0x1]
        %v535 = vld [vmem:[%s447 + $0xc8] sm:$0x1]
        %v536 = vld [vmem:[%s447 + $0xd0] sm:$0x1]
        %v537 = vld [vmem:[%s447 + $0xd8] sm:$0x1]
        %v538 = vld [vmem:[%s447 + $0xe0] sm:$0x1]
        %v539 = vld [vmem:[%s447 + $0xe8] sm:$0x1]
        %v540 = vld [vmem:[%s447 + $0xf0] sm:$0x1]
        %v541 = vld [vmem:[%s447 + $0xf8] sm:$0x1]
        %v542 = vld [vmem:[%s447 + $0x100] sm:$0x1]
        %v543 = vld [vmem:[%s447 + $0x108] sm:$0x1]
        %v544 = vld [vmem:[%s447 + $0x110] sm:$0x1]
        %v545 = vld [vmem:[%s447 + $0x118] sm:$0x1]
        %v546 = vld [vmem:[%s447 + $0x120] sm:$0x1]
        %v547 = vld [vmem:[%s447 + $0x128] sm:$0x1]
        %v548 = vld [vmem:[%s447 + $0x130] sm:$0x1]
        %v549 = vld [vmem:[%s447 + $0x138] sm:$0x1]
        %v550 = vld [vmem:[%s447 + $0x140] sm:$0x1]
        %v551 = vld [vmem:[%s447 + $0x148] sm:$0x1]
        %v552 = vld [vmem:[%s447 + $0x150] sm:$0x1]
        %v553 = vld [vmem:[%s447 + $0x158] sm:$0x1]
        %v554 = vld [vmem:[%s447 + $0x160] sm:$0x1]
        %v555 = vld [vmem:[%s447 + $0x168] sm:$0x1]
        %v556 = vld [vmem:[%s447 + $0x170] sm:$0x1]
        %v557 = vld [vmem:[%s447 + $0x178] sm:$0x1]
        %v558 = vld [vmem:[%s447 + $0x180] sm:$0x1]
        %v559 = vld [vmem:[%s447 + $0x188] sm:$0x1]
        %v560 = vld [vmem:[%s447 + $0x190] sm:$0x1]
        %v561 = vld [vmem:[%s447 + $0x198] sm:$0x1]
        %v562 = vld [vmem:[%s447 + $0x1a0] sm:$0x1]
        %v563 = vld [vmem:[%s447 + $0x1a8] sm:$0x1]
        %v564 = vld [vmem:[%s447 + $0x1b0] sm:$0x1]
        %v565 = vld [vmem:[%s447 + $0x1b8] sm:$0x1]
        %v566 = vld [vmem:[%s447 + $0x1c0] sm:$0x1]
        %v567 = vld [vmem:[%s447 + $0x1c8] sm:$0x1]
        %v568 = vld [vmem:[%s447 + $0x1d0] sm:$0x1]
        %v569 = vld [vmem:[%s447 + $0x1d8] sm:$0x1]
        %v570 = vld [vmem:[%s447 + $0x1e0] sm:$0x1]
        %v571 = vld [vmem:[%s447 + $0x1e8] sm:$0x1]
        %v572 = vld [vmem:[%s447 + $0x1f0] sm:$0x1]
        %v573 = vld [vmem:[%s447 + $0x1f8] sm:$0x1]
        %v638 = vrot.slane %v511, 7
        %vm639 = vcmask 1041409
        %v640 = vsel %vm639, %v638, %v510
        %v641 = vrot.slane %v512, 6
        %vm642 = vcmask 1042434
        %v643 = vsel %vm642, %v641, %v640
        %v644 = vrot.slane %v513, 5
        %vm645 = vcmask 1043459
        %v646 = vsel %vm645, %v644, %v643
        %v647 = vrot.slane %v514, 4
        %vm648 = vcmask 1044484
        %v649 = vsel %vm648, %v647, %v646
        %v650 = vrot.slane %v515, 3
        %vm651 = vcmask 1045509
        %v652 = vsel %vm651, %v650, %v649
        %v653 = vrot.slane %v516, 2
        %vm654 = vcmask 1046534
        %v655 = vsel %vm654, %v653, %v652
        %v656 = vrot.slane %v517, 1
        %vm657 = vcmask 1047559
        %v658 = vsel %vm657, %v656, %v655
        %v659 = vrot.slane %v519, 7
        %v660 = vsel %vm639, %v659, %v518
        %v661 = vrot.slane %v520, 6
        %v662 = vsel %vm642, %v661, %v660
        %v663 = vrot.slane %v521, 5
        %v664 = vsel %vm645, %v663, %v662
        %v665 = vrot.slane %v522, 4
        %v666 = vsel %vm648, %v665, %v664
        %v667 = vrot.slane %v523, 3
        %v668 = vsel %vm651, %v667, %v666
        %v669 = vrot.slane %v524, 2
        %v670 = vsel %vm654, %v669, %v668
        %v671 = vrot.slane %v525, 1
        %v672 = vsel %vm657, %v671, %v670
        %v673 = vrot.slane %v527, 7
        %v674 = vsel %vm639, %v673, %v526
        %v675 = vrot.slane %v528, 6
        %v676 = vsel %vm642, %v675, %v674
        %v677 = vrot.slane %v529, 5
        %v678 = vsel %vm645, %v677, %v676
        %v679 = vrot.slane %v530, 4
        %v680 = vsel %vm648, %v679, %v678
        %v681 = vrot.slane %v531, 3
        %v682 = vsel %vm651, %v681, %v680
        %v683 = vrot.slane %v532, 2
        %v684 = vsel %vm654, %v683, %v682
        %v685 = vrot.slane %v533, 1
        %v686 = vsel %vm657, %v685, %v684
        %v687 = vrot.slane %v535, 7
        %v688 = vsel %vm639, %v687, %v534
        %v689 = vrot.slane %v536, 6
        %v690 = vsel %vm642, %v689, %v688
        %v691 = vrot.slane %v537, 5
        %v692 = vsel %vm645, %v691, %v690
        %v693 = vrot.slane %v538, 4
        %v694 = vsel %vm648, %v693, %v692
        %v695 = vrot.slane %v539, 3
        %v696 = vsel %vm651, %v695, %v694
        %v697 = vrot.slane %v540, 2
        %v698 = vsel %vm654, %v697, %v696
        %v699 = vrot.slane %v541, 1
        %v700 = vsel %vm657, %v699, %v698
        %v701 = vrot.slane %v543, 7
        %v702 = vsel %vm639, %v701, %v542
        %v703 = vrot.slane %v544, 6
        %v704 = vsel %vm642, %v703, %v702
        %v705 = vrot.slane %v545, 5
        %v706 = vsel %vm645, %v705, %v704
        %v707 = vrot.slane %v546, 4
        %v708 = vsel %vm648, %v707, %v706
        %v709 = vrot.slane %v547, 3
        %v710 = vsel %vm651, %v709, %v708
        %v711 = vrot.slane %v548, 2
        %v712 = vsel %vm654, %v711, %v710
        %v713 = vrot.slane %v549, 1
        %v714 = vsel %vm657, %v713, %v712
        %v715 = vrot.slane %v551, 7
        %v716 = vsel %vm639, %v715, %v550
        %v717 = vrot.slane %v552, 6
        %v718 = vsel %vm642, %v717, %v716
        %v719 = vrot.slane %v553, 5
        %v720 = vsel %vm645, %v719, %v718
        %v721 = vrot.slane %v554, 4
        %v722 = vsel %vm648, %v721, %v720
        %v723 = vrot.slane %v555, 3
        %v724 = vsel %vm651, %v723, %v722
        %v725 = vrot.slane %v556, 2
        %v726 = vsel %vm654, %v725, %v724
        %v727 = vrot.slane %v557, 1
        %v728 = vsel %vm657, %v727, %v726
        %v729 = vrot.slane %v559, 7
        %v730 = vsel %vm639, %v729, %v558
        %v731 = vrot.slane %v560, 6
        %v732 = vsel %vm642, %v731, %v730
        %v733 = vrot.slane %v561, 5
        %v734 = vsel %vm645, %v733, %v732
        %v735 = vrot.slane %v562, 4
        %v736 = vsel %vm648, %v735, %v734
        %v737 = vrot.slane %v563, 3
        %v738 = vsel %vm651, %v737, %v736
        %v739 = vrot.slane %v564, 2
        %v740 = vsel %vm654, %v739, %v738
        %v741 = vrot.slane %v565, 1
        %v742 = vsel %vm657, %v741, %v740
        %v743 = vrot.slane %v567, 7
        %v744 = vsel %vm639, %v743, %v566
        %v745 = vrot.slane %v568, 6
        %v746 = vsel %vm642, %v745, %v744
        %v747 = vrot.slane %v569, 5
        %v748 = vsel %vm645, %v747, %v746
        %v749 = vrot.slane %v570, 4
        %v750 = vsel %vm648, %v749, %v748
        %v751 = vrot.slane %v571, 3
        %v752 = vsel %vm651, %v751, %v750
        %v753 = vrot.slane %v572, 2
        %v754 = vsel %vm654, %v753, %v752
        %v755 = vrot.slane %v573, 1
        %v756 = vsel %vm657, %v755, %v754
        %v765 = vmax.f32 %v494, %v658
        %v766 = vmax.f32 %v495, %v672
        %v767 = vmax.f32 %v496, %v686
        %v768 = vmax.f32 %v497, %v700
        %v769 = vmax.f32 %v498, %v714
        %v770 = vmax.f32 %v499, %v728
        %v771 = vmax.f32 %v500, %v742
        %v772 = vmax.f32 %v501, %v756
        %v773 = vadd.f32 %v502, %v658
        %v774 = vadd.f32 %v503, %v672
        %v775 = vadd.f32 %v504, %v686
        %v776 = vadd.f32 %v505, %v700
        %v777 = vadd.f32 %v506, %v714
        %v778 = vadd.f32 %v507, %v728
        %v779 = vadd.f32 %v508, %v742
        %v780 = vadd.f32 %v509, %v756
        %v781 = vld [vmem:[%s447 + $0x1] sm:$0x1]
        %v782 = vld [vmem:[%s447 + $0x9] sm:$0x1]
        %v783 = vld [vmem:[%s447 + $0x11] sm:$0x1]
        %v784 = vld [vmem:[%s447 + $0x19] sm:$0x1]
        %v785 = vld [vmem:[%s447 + $0x21] sm:$0x1]
        %v786 = vld [vmem:[%s447 + $0x29] sm:$0x1]
        %v787 = vld [vmem:[%s447 + $0x31] sm:$0x1]
        %v788 = vld [vmem:[%s447 + $0x39] sm:$0x1]
        %v789 = vld [vmem:[%s447 + $0x41] sm:$0x1]
        %v790 = vld [vmem:[%s447 + $0x49] sm:$0x1]
        %v791 = vld [vmem:[%s447 + $0x51] sm:$0x1]
        %v792 = vld [vmem:[%s447 + $0x59] sm:$0x1]
        %v793 = vld [vmem:[%s447 + $0x61] sm:$0x1]
        %v794 = vld [vmem:[%s447 + $0x69] sm:$0x1]
        %v795 = vld [vmem:[%s447 + $0x71] sm:$0x1]
        %v796 = vld [vmem:[%s447 + $0x79] sm:$0x1]
        %v797 = vld [vmem:[%s447 + $0x81] sm:$0x1]
        %v798 = vld [vmem:[%s447 + $0x89] sm:$0x1]
        %v799 = vld [vmem:[%s447 + $0x91] sm:$0x1]
        %v800 = vld [vmem:[%s447 + $0x99] sm:$0x1]
        %v801 = vld [vmem:[%s447 + $0xa1] sm:$0x1]
        %v802 = vld [vmem:[%s447 + $0xa9] sm:$0x1]
        %v803 = vld [vmem:[%s447 + $0xb1] sm:$0x1]
        %v804 = vld [vmem:[%s447 + $0xb9] sm:$0x1]
        %v805 = vld [vmem:[%s447 + $0xc1] sm:$0x1]
        %v806 = vld [vmem:[%s447 + $0xc9] sm:$0x1]
        %v807 = vld [vmem:[%s447 + $0xd1] sm:$0x1]
        %v808 = vld [vmem:[%s447 + $0xd9] sm:$0x1]
        %v809 = vld [vmem:[%s447 + $0xe1] sm:$0x1]
        %v810 = vld [vmem:[%s447 + $0xe9] sm:$0x1]
        %v811 = vld [vmem:[%s447 + $0xf1] sm:$0x1]
        %v812 = vld [vmem:[%s447 + $0xf9] sm:$0x1]
        %v813 = vld [vmem:[%s447 + $0x101] sm:$0x1]
        %v814 = vld [vmem:[%s447 + $0x109] sm:$0x1]
        %v815 = vld [vmem:[%s447 + $0x111] sm:$0x1]
        %v816 = vld [vmem:[%s447 + $0x119] sm:$0x1]
        %v817 = vld [vmem:[%s447 + $0x121] sm:$0x1]
        %v818 = vld [vmem:[%s447 + $0x129] sm:$0x1]
        %v819 = vld [vmem:[%s447 + $0x131] sm:$0x1]
        %v820 = vld [vmem:[%s447 + $0x139] sm:$0x1]
        %v821 = vld [vmem:[%s447 + $0x141] sm:$0x1]
        %v822 = vld [vmem:[%s447 + $0x149] sm:$0x1]
        %v823 = vld [vmem:[%s447 + $0x151] sm:$0x1]
        %v824 = vld [vmem:[%s447 + $0x159] sm:$0x1]
        %v825 = vld [vmem:[%s447 + $0x161] sm:$0x1]
        %v826 = vld [vmem:[%s447 + $0x169] sm:$0x1]
        %v827 = vld [vmem:[%s447 + $0x171] sm:$0x1]
        %v828 = vld [vmem:[%s447 + $0x179] sm:$0x1]
        %v829 = vld [vmem:[%s447 + $0x181] sm:$0x1]
        %v830 = vld [vmem:[%s447 + $0x189] sm:$0x1]
        %v831 = vld [vmem:[%s447 + $0x191] sm:$0x1]
        %v832 = vld [vmem:[%s447 + $0x199] sm:$0x1]
        %v833 = vld [vmem:[%s447 + $0x1a1] sm:$0x1]
        %v834 = vld [vmem:[%s447 + $0x1a9] sm:$0x1]
        %v835 = vld [vmem:[%s447 + $0x1b1] sm:$0x1]
        %v836 = vld [vmem:[%s447 + $0x1b9] sm:$0x1]
        %v837 = vld [vmem:[%s447 + $0x1c1] sm:$0x1]
        %v838 = vld [vmem:[%s447 + $0x1c9] sm:$0x1]
        %v839 = vld [vmem:[%s447 + $0x1d1] sm:$0x1]
        %v840 = vld [vmem:[%s447 + $0x1d9] sm:$0x1]
        %v841 = vld [vmem:[%s447 + $0x1e1] sm:$0x1]
        %v842 = vld [vmem:[%s447 + $0x1e9] sm:$0x1]
        %v843 = vld [vmem:[%s447 + $0x1f1] sm:$0x1]
        %v844 = vld [vmem:[%s447 + $0x1f9] sm:$0x1]
        %v909 = vrot.slane %v782, 7
        %v910 = vsel %vm639, %v909, %v781
        %v911 = vrot.slane %v783, 6
        %v912 = vsel %vm642, %v911, %v910
        %v913 = vrot.slane %v784, 5
        %v914 = vsel %vm645, %v913, %v912
        %v915 = vrot.slane %v785, 4
        %v916 = vsel %vm648, %v915, %v914
        %v917 = vrot.slane %v786, 3
        %v918 = vsel %vm651, %v917, %v916
        %v919 = vrot.slane %v787, 2
        %v920 = vsel %vm654, %v919, %v918
        %v921 = vrot.slane %v788, 1
        %v922 = vsel %vm657, %v921, %v920
        %v923 = vrot.slane %v790, 7
        %v924 = vsel %vm639, %v923, %v789
        %v925 = vrot.slane %v791, 6
        %v926 = vsel %vm642, %v925, %v924
        %v927 = vrot.slane %v792, 5
        %v928 = vsel %vm645, %v927, %v926
        %v929 = vrot.slane %v793, 4
        %v930 = vsel %vm648, %v929, %v928
        %v931 = vrot.slane %v794, 3
        %v932 = vsel %vm651, %v931, %v930
        %v933 = vrot.slane %v795, 2
        %v934 = vsel %vm654, %v933, %v932
        %v935 = vrot.slane %v796, 1
        %v936 = vsel %vm657, %v935, %v934
        %v937 = vrot.slane %v798, 7
        %v938 = vsel %vm639, %v937, %v797
        %v939 = vrot.slane %v799, 6
        %v940 = vsel %vm642, %v939, %v938
        %v941 = vrot.slane %v800, 5
        %v942 = vsel %vm645, %v941, %v940
        %v943 = vrot.slane %v801, 4
        %v944 = vsel %vm648, %v943, %v942
        %v945 = vrot.slane %v802, 3
        %v946 = vsel %vm651, %v945, %v944
        %v947 = vrot.slane %v803, 2
        %v948 = vsel %vm654, %v947, %v946
        %v949 = vrot.slane %v804, 1
        %v950 = vsel %vm657, %v949, %v948
        %v951 = vrot.slane %v806, 7
        %v952 = vsel %vm639, %v951, %v805
        %v953 = vrot.slane %v807, 6
        %v954 = vsel %vm642, %v953, %v952
        %v955 = vrot.slane %v808, 5
        %v956 = vsel %vm645, %v955, %v954
        %v957 = vrot.slane %v809, 4
        %v958 = vsel %vm648, %v957, %v956
        %v959 = vrot.slane %v810, 3
        %v960 = vsel %vm651, %v959, %v958
        %v961 = vrot.slane %v811, 2
        %v962 = vsel %vm654, %v961, %v960
        %v963 = vrot.slane %v812, 1
        %v964 = vsel %vm657, %v963, %v962
        %v965 = vrot.slane %v814, 7
        %v966 = vsel %vm639, %v965, %v813
        %v967 = vrot.slane %v815, 6
        %v968 = vsel %vm642, %v967, %v966
        %v969 = vrot.slane %v816, 5
        %v970 = vsel %vm645, %v969, %v968
        %v971 = vrot.slane %v817, 4
        %v972 = vsel %vm648, %v971, %v970
        %v973 = vrot.slane %v818, 3
        %v974 = vsel %vm651, %v973, %v972
        %v975 = vrot.slane %v819, 2
        %v976 = vsel %vm654, %v975, %v974
        %v977 = vrot.slane %v820, 1
        %v978 = vsel %vm657, %v977, %v976
        %v979 = vrot.slane %v822, 7
        %v980 = vsel %vm639, %v979, %v821
        %v981 = vrot.slane %v823, 6
        %v982 = vsel %vm642, %v981, %v980
        %v983 = vrot.slane %v824, 5
        %v984 = vsel %vm645, %v983, %v982
        %v985 = vrot.slane %v825, 4
        %v986 = vsel %vm648, %v985, %v984
        %v987 = vrot.slane %v826, 3
        %v988 = vsel %vm651, %v987, %v986
        %v989 = vrot.slane %v827, 2
        %v990 = vsel %vm654, %v989, %v988
        %v991 = vrot.slane %v828, 1
        %v992 = vsel %vm657, %v991, %v990
        %v993 = vrot.slane %v830, 7
        %v994 = vsel %vm639, %v993, %v829
        %v995 = vrot.slane %v831, 6
        %v996 = vsel %vm642, %v995, %v994
        %v997 = vrot.slane %v832, 5
        %v998 = vsel %vm645, %v997, %v996
        %v999 = vrot.slane %v833, 4
        %v1000 = vsel %vm648, %v999, %v998
        %v1001 = vrot.slane %v834, 3
        %v1002 = vsel %vm651, %v1001, %v1000
        %v1003 = vrot.slane %v835, 2
        %v1004 = vsel %vm654, %v1003, %v1002
        %v1005 = vrot.slane %v836, 1
        %v1006 = vsel %vm657, %v1005, %v1004
        %v1007 = vrot.slane %v838, 7
        %v1008 = vsel %vm639, %v1007, %v837
        %v1009 = vrot.slane %v839, 6
        %v1010 = vsel %vm642, %v1009, %v1008
        %v1011 = vrot.slane %v840, 5
        %v1012 = vsel %vm645, %v1011, %v1010
        %v1013 = vrot.slane %v841, 4
        %v1014 = vsel %vm648, %v1013, %v1012
        %v1015 = vrot.slane %v842, 3
        %v1016 = vsel %vm651, %v1015, %v1014
        %v1017 = vrot.slane %v843, 2
        %v1018 = vsel %vm654, %v1017, %v1016
        %v1019 = vrot.slane %v844, 1
        %v1020 = vsel %vm657, %v1019, %v1018
        %v1029 = vmax.f32 %v765, %v922
        %v1030 = vmax.f32 %v766, %v936
        %v1031 = vmax.f32 %v767, %v950
        %v1032 = vmax.f32 %v768, %v964
        %v1033 = vmax.f32 %v769, %v978
        %v1034 = vmax.f32 %v770, %v992
        %v1035 = vmax.f32 %v771, %v1006
        %v1036 = vmax.f32 %v772, %v1020
        %v1037 = vadd.f32 %v773, %v922
        %v1038 = vadd.f32 %v774, %v936
        %v1039 = vadd.f32 %v775, %v950
        %v1040 = vadd.f32 %v776, %v964
        %v1041 = vadd.f32 %v777, %v978
        %v1042 = vadd.f32 %v778, %v992
        %v1043 = vadd.f32 %v779, %v1006
        %v1044 = vadd.f32 %v780, %v1020
        %v1045 = vld [vmem:[%s447 + $0x2] sm:$0x1]
        %v1046 = vld [vmem:[%s447 + $0xa] sm:$0x1]
        %v1047 = vld [vmem:[%s447 + $0x12] sm:$0x1]
        %v1048 = vld [vmem:[%s447 + $0x1a] sm:$0x1]
        %v1049 = vld [vmem:[%s447 + $0x22] sm:$0x1]
        %v1050 = vld [vmem:[%s447 + $0x2a] sm:$0x1]
        %v1051 = vld [vmem:[%s447 + $0x32] sm:$0x1]
        %v1052 = vld [vmem:[%s447 + $0x3a] sm:$0x1]
        %v1053 = vld [vmem:[%s447 + $0x42] sm:$0x1]
        %v1054 = vld [vmem:[%s447 + $0x4a] sm:$0x1]
        %v1055 = vld [vmem:[%s447 + $0x52] sm:$0x1]
        %v1056 = vld [vmem:[%s447 + $0x5a] sm:$0x1]
        %v1057 = vld [vmem:[%s447 + $0x62] sm:$0x1]
        %v1058 = vld [vmem:[%s447 + $0x6a] sm:$0x1]
        %v1059 = vld [vmem:[%s447 + $0x72] sm:$0x1]
        %v1060 = vld [vmem:[%s447 + $0x7a] sm:$0x1]
        %v1061 = vld [vmem:[%s447 + $0x82] sm:$0x1]
        %v1062 = vld [vmem:[%s447 + $0x8a] sm:$0x1]
        %v1063 = vld [vmem:[%s447 + $0x92] sm:$0x1]
        %v1064 = vld [vmem:[%s447 + $0x9a] sm:$0x1]
        %v1065 = vld [vmem:[%s447 + $0xa2] sm:$0x1]
        %v1066 = vld [vmem:[%s447 + $0xaa] sm:$0x1]
        %v1067 = vld [vmem:[%s447 + $0xb2] sm:$0x1]
        %v1068 = vld [vmem:[%s447 + $0xba] sm:$0x1]
        %v1069 = vld [vmem:[%s447 + $0xc2] sm:$0x1]
        %v1070 = vld [vmem:[%s447 + $0xca] sm:$0x1]
        %v1071 = vld [vmem:[%s447 + $0xd2] sm:$0x1]
        %v1072 = vld [vmem:[%s447 + $0xda] sm:$0x1]
        %v1073 = vld [vmem:[%s447 + $0xe2] sm:$0x1]
        %v1074 = vld [vmem:[%s447 + $0xea] sm:$0x1]
        %v1075 = vld [vmem:[%s447 + $0xf2] sm:$0x1]
        %v1076 = vld [vmem:[%s447 + $0xfa] sm:$0x1]
        %v1077 = vld [vmem:[%s447 + $0x102] sm:$0x1]
        %v1078 = vld [vmem:[%s447 + $0x10a] sm:$0x1]
        %v1079 = vld [vmem:[%s447 + $0x112] sm:$0x1]
        %v1080 = vld [vmem:[%s447 + $0x11a] sm:$0x1]
        %v1081 = vld [vmem:[%s447 + $0x122] sm:$0x1]
        %v1082 = vld [vmem:[%s447 + $0x12a] sm:$0x1]
        %v1083 = vld [vmem:[%s447 + $0x132] sm:$0x1]
        %v1084 = vld [vmem:[%s447 + $0x13a] sm:$0x1]
        %v1085 = vld [vmem:[%s447 + $0x142] sm:$0x1]
        %v1086 = vld [vmem:[%s447 + $0x14a] sm:$0x1]
        %v1087 = vld [vmem:[%s447 + $0x152] sm:$0x1]
        %v1088 = vld [vmem:[%s447 + $0x15a] sm:$0x1]
        %v1089 = vld [vmem:[%s447 + $0x162] sm:$0x1]
        %v1090 = vld [vmem:[%s447 + $0x16a] sm:$0x1]
        %v1091 = vld [vmem:[%s447 + $0x172] sm:$0x1]
        %v1092 = vld [vmem:[%s447 + $0x17a] sm:$0x1]
        %v1093 = vld [vmem:[%s447 + $0x182] sm:$0x1]
        %v1094 = vld [vmem:[%s447 + $0x18a] sm:$0x1]
        %v1095 = vld [vmem:[%s447 + $0x192] sm:$0x1]
        %v1096 = vld [vmem:[%s447 + $0x19a] sm:$0x1]
        %v1097 = vld [vmem:[%s447 + $0x1a2] sm:$0x1]
        %v1098 = vld [vmem:[%s447 + $0x1aa] sm:$0x1]
        %v1099 = vld [vmem:[%s447 + $0x1b2] sm:$0x1]
        %v1100 = vld [vmem:[%s447 + $0x1ba] sm:$0x1]
        %v1101 = vld [vmem:[%s447 + $0x1c2] sm:$0x1]
        %v1102 = vld [vmem:[%s447 + $0x1ca] sm:$0x1]
        %v1103 = vld [vmem:[%s447 + $0x1d2] sm:$0x1]
        %v1104 = vld [vmem:[%s447 + $0x1da] sm:$0x1]
        %v1105 = vld [vmem:[%s447 + $0x1e2] sm:$0x1]
        %v1106 = vld [vmem:[%s447 + $0x1ea] sm:$0x1]
        %v1107 = vld [vmem:[%s447 + $0x1f2] sm:$0x1]
        %v1108 = vld [vmem:[%s447 + $0x1fa] sm:$0x1]
        %v1173 = vrot.slane %v1046, 7
        %v1174 = vsel %vm639, %v1173, %v1045
        %v1175 = vrot.slane %v1047, 6
        %v1176 = vsel %vm642, %v1175, %v1174
        %v1177 = vrot.slane %v1048, 5
        %v1178 = vsel %vm645, %v1177, %v1176
        %v1179 = vrot.slane %v1049, 4
        %v1180 = vsel %vm648, %v1179, %v1178
        %v1181 = vrot.slane %v1050, 3
        %v1182 = vsel %vm651, %v1181, %v1180
        %v1183 = vrot.slane %v1051, 2
        %v1184 = vsel %vm654, %v1183, %v1182
        %v1185 = vrot.slane %v1052, 1
        %v1186 = vsel %vm657, %v1185, %v1184
        %v1187 = vrot.slane %v1054, 7
        %v1188 = vsel %vm639, %v1187, %v1053
        %v1189 = vrot.slane %v1055, 6
        %v1190 = vsel %vm642, %v1189, %v1188
        %v1191 = vrot.slane %v1056, 5
        %v1192 = vsel %vm645, %v1191, %v1190
        %v1193 = vrot.slane %v1057, 4
        %v1194 = vsel %vm648, %v1193, %v1192
        %v1195 = vrot.slane %v1058, 3
        %v1196 = vsel %vm651, %v1195, %v1194
        %v1197 = vrot.slane %v1059, 2
        %v1198 = vsel %vm654, %v1197, %v1196
        %v1199 = vrot.slane %v1060, 1
        %v1200 = vsel %vm657, %v1199, %v1198
        %v1201 = vrot.slane %v1062, 7
        %v1202 = vsel %vm639, %v1201, %v1061
        %v1203 = vrot.slane %v1063, 6
        %v1204 = vsel %vm642, %v1203, %v1202
        %v1205 = vrot.slane %v1064, 5
        %v1206 = vsel %vm645, %v1205, %v1204
        %v1207 = vrot.slane %v1065, 4
        %v1208 = vsel %vm648, %v1207, %v1206
        %v1209 = vrot.slane %v1066, 3
        %v1210 = vsel %vm651, %v1209, %v1208
        %v1211 = vrot.slane %v1067, 2
        %v1212 = vsel %vm654, %v1211, %v1210
        %v1213 = vrot.slane %v1068, 1
        %v1214 = vsel %vm657, %v1213, %v1212
        %v1215 = vrot.slane %v1070, 7
        %v1216 = vsel %vm639, %v1215, %v1069
        %v1217 = vrot.slane %v1071, 6
        %v1218 = vsel %vm642, %v1217, %v1216
        %v1219 = vrot.slane %v1072, 5
        %v1220 = vsel %vm645, %v1219, %v1218
        %v1221 = vrot.slane %v1073, 4
        %v1222 = vsel %vm648, %v1221, %v1220
        %v1223 = vrot.slane %v1074, 3
        %v1224 = vsel %vm651, %v1223, %v1222
        %v1225 = vrot.slane %v1075, 2
        %v1226 = vsel %vm654, %v1225, %v1224
        %v1227 = vrot.slane %v1076, 1
        %v1228 = vsel %vm657, %v1227, %v1226
        %v1229 = vrot.slane %v1078, 7
        %v1230 = vsel %vm639, %v1229, %v1077
        %v1231 = vrot.slane %v1079, 6
        %v1232 = vsel %vm642, %v1231, %v1230
        %v1233 = vrot.slane %v1080, 5
        %v1234 = vsel %vm645, %v1233, %v1232
        %v1235 = vrot.slane %v1081, 4
        %v1236 = vsel %vm648, %v1235, %v1234
        %v1237 = vrot.slane %v1082, 3
        %v1238 = vsel %vm651, %v1237, %v1236
        %v1239 = vrot.slane %v1083, 2
        %v1240 = vsel %vm654, %v1239, %v1238
        %v1241 = vrot.slane %v1084, 1
        %v1242 = vsel %vm657, %v1241, %v1240
        %v1243 = vrot.slane %v1086, 7
        %v1244 = vsel %vm639, %v1243, %v1085
        %v1245 = vrot.slane %v1087, 6
        %v1246 = vsel %vm642, %v1245, %v1244
        %v1247 = vrot.slane %v1088, 5
        %v1248 = vsel %vm645, %v1247, %v1246
        %v1249 = vrot.slane %v1089, 4
        %v1250 = vsel %vm648, %v1249, %v1248
        %v1251 = vrot.slane %v1090, 3
        %v1252 = vsel %vm651, %v1251, %v1250
        %v1253 = vrot.slane %v1091, 2
        %v1254 = vsel %vm654, %v1253, %v1252
        %v1255 = vrot.slane %v1092, 1
        %v1256 = vsel %vm657, %v1255, %v1254
        %v1257 = vrot.slane %v1094, 7
        %v1258 = vsel %vm639, %v1257, %v1093
        %v1259 = vrot.slane %v1095, 6
        %v1260 = vsel %vm642, %v1259, %v1258
        %v1261 = vrot.slane %v1096, 5
        %v1262 = vsel %vm645, %v1261, %v1260
        %v1263 = vrot.slane %v1097, 4
        %v1264 = vsel %vm648, %v1263, %v1262
        %v1265 = vrot.slane %v1098, 3
        %v1266 = vsel %vm651, %v1265, %v1264
        %v1267 = vrot.slane %v1099, 2
        %v1268 = vsel %vm654, %v1267, %v1266
        %v1269 = vrot.slane %v1100, 1
        %v1270 = vsel %vm657, %v1269, %v1268
        %v1271 = vrot.slane %v1102, 7
        %v1272 = vsel %vm639, %v1271, %v1101
        %v1273 = vrot.slane %v1103, 6
        %v1274 = vsel %vm642, %v1273, %v1272
        %v1275 = vrot.slane %v1104, 5
        %v1276 = vsel %vm645, %v1275, %v1274
        %v1277 = vrot.slane %v1105, 4
        %v1278 = vsel %vm648, %v1277, %v1276
        %v1279 = vrot.slane %v1106, 3
        %v1280 = vsel %vm651, %v1279, %v1278
        %v1281 = vrot.slane %v1107, 2
        %v1282 = vsel %vm654, %v1281, %v1280
        %v1283 = vrot.slane %v1108, 1
        %v1284 = vsel %vm657, %v1283, %v1282
        %v1293 = vmax.f32 %v1029, %v1186
        %v1294 = vmax.f32 %v1030, %v1200
        %v1295 = vmax.f32 %v1031, %v1214
        %v1296 = vmax.f32 %v1032, %v1228
        %v1297 = vmax.f32 %v1033, %v1242
        %v1298 = vmax.f32 %v1034, %v1256
        %v1299 = vmax.f32 %v1035, %v1270
        %v1300 = vmax.f32 %v1036, %v1284
        %v1301 = vadd.f32 %v1037, %v1186
        %v1302 = vadd.f32 %v1038, %v1200
        %v1303 = vadd.f32 %v1039, %v1214
        %v1304 = vadd.f32 %v1040, %v1228
        %v1305 = vadd.f32 %v1041, %v1242
        %v1306 = vadd.f32 %v1042, %v1256
        %v1307 = vadd.f32 %v1043, %v1270
        %v1308 = vadd.f32 %v1044, %v1284
        %v1309 = vld [vmem:[%s447 + $0x3] sm:$0x1]
        %v1310 = vld [vmem:[%s447 + $0xb] sm:$0x1]
        %v1311 = vld [vmem:[%s447 + $0x13] sm:$0x1]
        %v1312 = vld [vmem:[%s447 + $0x1b] sm:$0x1]
        %v1313 = vld [vmem:[%s447 + $0x23] sm:$0x1]
        %v1314 = vld [vmem:[%s447 + $0x2b] sm:$0x1]
        %v1315 = vld [vmem:[%s447 + $0x33] sm:$0x1]
        %v1316 = vld [vmem:[%s447 + $0x3b] sm:$0x1]
        %v1317 = vld [vmem:[%s447 + $0x43] sm:$0x1]
        %v1318 = vld [vmem:[%s447 + $0x4b] sm:$0x1]
        %v1319 = vld [vmem:[%s447 + $0x53] sm:$0x1]
        %v1320 = vld [vmem:[%s447 + $0x5b] sm:$0x1]
        %v1321 = vld [vmem:[%s447 + $0x63] sm:$0x1]
        %v1322 = vld [vmem:[%s447 + $0x6b] sm:$0x1]
        %v1323 = vld [vmem:[%s447 + $0x73] sm:$0x1]
        %v1324 = vld [vmem:[%s447 + $0x7b] sm:$0x1]
        %v1325 = vld [vmem:[%s447 + $0x83] sm:$0x1]
        %v1326 = vld [vmem:[%s447 + $0x8b] sm:$0x1]
        %v1327 = vld [vmem:[%s447 + $0x93] sm:$0x1]
        %v1328 = vld [vmem:[%s447 + $0x9b] sm:$0x1]
        %v1329 = vld [vmem:[%s447 + $0xa3] sm:$0x1]
        %v1330 = vld [vmem:[%s447 + $0xab] sm:$0x1]
        %v1331 = vld [vmem:[%s447 + $0xb3] sm:$0x1]
        %v1332 = vld [vmem:[%s447 + $0xbb] sm:$0x1]
        %v1333 = vld [vmem:[%s447 + $0xc3] sm:$0x1]
        %v1334 = vld [vmem:[%s447 + $0xcb] sm:$0x1]
        %v1335 = vld [vmem:[%s447 + $0xd3] sm:$0x1]
        %v1336 = vld [vmem:[%s447 + $0xdb] sm:$0x1]
        %v1337 = vld [vmem:[%s447 + $0xe3] sm:$0x1]
        %v1338 = vld [vmem:[%s447 + $0xeb] sm:$0x1]
        %v1339 = vld [vmem:[%s447 + $0xf3] sm:$0x1]
        %v1340 = vld [vmem:[%s447 + $0xfb] sm:$0x1]
        %v1341 = vld [vmem:[%s447 + $0x103] sm:$0x1]
        %v1342 = vld [vmem:[%s447 + $0x10b] sm:$0x1]
        %v1343 = vld [vmem:[%s447 + $0x113] sm:$0x1]
        %v1344 = vld [vmem:[%s447 + $0x11b] sm:$0x1]
        %v1345 = vld [vmem:[%s447 + $0x123] sm:$0x1]
        %v1346 = vld [vmem:[%s447 + $0x12b] sm:$0x1]
        %v1347 = vld [vmem:[%s447 + $0x133] sm:$0x1]
        %v1348 = vld [vmem:[%s447 + $0x13b] sm:$0x1]
        %v1349 = vld [vmem:[%s447 + $0x143] sm:$0x1]
        %v1350 = vld [vmem:[%s447 + $0x14b] sm:$0x1]
        %v1351 = vld [vmem:[%s447 + $0x153] sm:$0x1]
        %v1352 = vld [vmem:[%s447 + $0x15b] sm:$0x1]
        %v1353 = vld [vmem:[%s447 + $0x163] sm:$0x1]
        %v1354 = vld [vmem:[%s447 + $0x16b] sm:$0x1]
        %v1355 = vld [vmem:[%s447 + $0x173] sm:$0x1]
        %v1356 = vld [vmem:[%s447 + $0x17b] sm:$0x1]
        %v1357 = vld [vmem:[%s447 + $0x183] sm:$0x1]
        %v1358 = vld [vmem:[%s447 + $0x18b] sm:$0x1]
        %v1359 = vld [vmem:[%s447 + $0x193] sm:$0x1]
        %v1360 = vld [vmem:[%s447 + $0x19b] sm:$0x1]
        %v1361 = vld [vmem:[%s447 + $0x1a3] sm:$0x1]
        %v1362 = vld [vmem:[%s447 + $0x1ab] sm:$0x1]
        %v1363 = vld [vmem:[%s447 + $0x1b3] sm:$0x1]
        %v1364 = vld [vmem:[%s447 + $0x1bb] sm:$0x1]
        %v1365 = vld [vmem:[%s447 + $0x1c3] sm:$0x1]
        %v1366 = vld [vmem:[%s447 + $0x1cb] sm:$0x1]
        %v1367 = vld [vmem:[%s447 + $0x1d3] sm:$0x1]
        %v1368 = vld [vmem:[%s447 + $0x1db] sm:$0x1]
        %v1369 = vld [vmem:[%s447 + $0x1e3] sm:$0x1]
        %v1370 = vld [vmem:[%s447 + $0x1eb] sm:$0x1]
        %v1371 = vld [vmem:[%s447 + $0x1f3] sm:$0x1]
        %v1372 = vld [vmem:[%s447 + $0x1fb] sm:$0x1]
        %v1437 = vrot.slane %v1310, 7
        %v1438 = vsel %vm639, %v1437, %v1309
        %v1439 = vrot.slane %v1311, 6
        %v1440 = vsel %vm642, %v1439, %v1438
        %v1441 = vrot.slane %v1312, 5
        %v1442 = vsel %vm645, %v1441, %v1440
        %v1443 = vrot.slane %v1313, 4
        %v1444 = vsel %vm648, %v1443, %v1442
        %v1445 = vrot.slane %v1314, 3
        %v1446 = vsel %vm651, %v1445, %v1444
        %v1447 = vrot.slane %v1315, 2
        %v1448 = vsel %vm654, %v1447, %v1446
        %v1449 = vrot.slane %v1316, 1
        %v1450 = vsel %vm657, %v1449, %v1448
        %v1451 = vrot.slane %v1318, 7
        %v1452 = vsel %vm639, %v1451, %v1317
        %v1453 = vrot.slane %v1319, 6
        %v1454 = vsel %vm642, %v1453, %v1452
        %v1455 = vrot.slane %v1320, 5
        %v1456 = vsel %vm645, %v1455, %v1454
        %v1457 = vrot.slane %v1321, 4
        %v1458 = vsel %vm648, %v1457, %v1456
        %v1459 = vrot.slane %v1322, 3
        %v1460 = vsel %vm651, %v1459, %v1458
        %v1461 = vrot.slane %v1323, 2
        %v1462 = vsel %vm654, %v1461, %v1460
        %v1463 = vrot.slane %v1324, 1
        %v1464 = vsel %vm657, %v1463, %v1462
        %v1465 = vrot.slane %v1326, 7
        %v1466 = vsel %vm639, %v1465, %v1325
        %v1467 = vrot.slane %v1327, 6
        %v1468 = vsel %vm642, %v1467, %v1466
        %v1469 = vrot.slane %v1328, 5
        %v1470 = vsel %vm645, %v1469, %v1468
        %v1471 = vrot.slane %v1329, 4
        %v1472 = vsel %vm648, %v1471, %v1470
        %v1473 = vrot.slane %v1330, 3
        %v1474 = vsel %vm651, %v1473, %v1472
        %v1475 = vrot.slane %v1331, 2
        %v1476 = vsel %vm654, %v1475, %v1474
        %v1477 = vrot.slane %v1332, 1
        %v1478 = vsel %vm657, %v1477, %v1476
        %v1479 = vrot.slane %v1334, 7
        %v1480 = vsel %vm639, %v1479, %v1333
        %v1481 = vrot.slane %v1335, 6
        %v1482 = vsel %vm642, %v1481, %v1480
        %v1483 = vrot.slane %v1336, 5
        %v1484 = vsel %vm645, %v1483, %v1482
        %v1485 = vrot.slane %v1337, 4
        %v1486 = vsel %vm648, %v1485, %v1484
        %v1487 = vrot.slane %v1338, 3
        %v1488 = vsel %vm651, %v1487, %v1486
        %v1489 = vrot.slane %v1339, 2
        %v1490 = vsel %vm654, %v1489, %v1488
        %v1491 = vrot.slane %v1340, 1
        %v1492 = vsel %vm657, %v1491, %v1490
        %v1493 = vrot.slane %v1342, 7
        %v1494 = vsel %vm639, %v1493, %v1341
        %v1495 = vrot.slane %v1343, 6
        %v1496 = vsel %vm642, %v1495, %v1494
        %v1497 = vrot.slane %v1344, 5
        %v1498 = vsel %vm645, %v1497, %v1496
        %v1499 = vrot.slane %v1345, 4
        %v1500 = vsel %vm648, %v1499, %v1498
        %v1501 = vrot.slane %v1346, 3
        %v1502 = vsel %vm651, %v1501, %v1500
        %v1503 = vrot.slane %v1347, 2
        %v1504 = vsel %vm654, %v1503, %v1502
        %v1505 = vrot.slane %v1348, 1
        %v1506 = vsel %vm657, %v1505, %v1504
        %v1507 = vrot.slane %v1350, 7
        %v1508 = vsel %vm639, %v1507, %v1349
        %v1509 = vrot.slane %v1351, 6
        %v1510 = vsel %vm642, %v1509, %v1508
        %v1511 = vrot.slane %v1352, 5
        %v1512 = vsel %vm645, %v1511, %v1510
        %v1513 = vrot.slane %v1353, 4
        %v1514 = vsel %vm648, %v1513, %v1512
        %v1515 = vrot.slane %v1354, 3
        %v1516 = vsel %vm651, %v1515, %v1514
        %v1517 = vrot.slane %v1355, 2
        %v1518 = vsel %vm654, %v1517, %v1516
        %v1519 = vrot.slane %v1356, 1
        %v1520 = vsel %vm657, %v1519, %v1518
        %v1521 = vrot.slane %v1358, 7
        %v1522 = vsel %vm639, %v1521, %v1357
        %v1523 = vrot.slane %v1359, 6
        %v1524 = vsel %vm642, %v1523, %v1522
        %v1525 = vrot.slane %v1360, 5
        %v1526 = vsel %vm645, %v1525, %v1524
        %v1527 = vrot.slane %v1361, 4
        %v1528 = vsel %vm648, %v1527, %v1526
        %v1529 = vrot.slane %v1362, 3
        %v1530 = vsel %vm651, %v1529, %v1528
        %v1531 = vrot.slane %v1363, 2
        %v1532 = vsel %vm654, %v1531, %v1530
        %v1533 = vrot.slane %v1364, 1
        %v1534 = vsel %vm657, %v1533, %v1532
        %v1535 = vrot.slane %v1366, 7
        %v1536 = vsel %vm639, %v1535, %v1365
        %v1537 = vrot.slane %v1367, 6
        %v1538 = vsel %vm642, %v1537, %v1536
        %v1539 = vrot.slane %v1368, 5
        %v1540 = vsel %vm645, %v1539, %v1538
        %v1541 = vrot.slane %v1369, 4
        %v1542 = vsel %vm648, %v1541, %v1540
        %v1543 = vrot.slane %v1370, 3
        %v1544 = vsel %vm651, %v1543, %v1542
        %v1545 = vrot.slane %v1371, 2
        %v1546 = vsel %vm654, %v1545, %v1544
        %v1547 = vrot.slane %v1372, 1
        %v1548 = vsel %vm657, %v1547, %v1546
        %v1557 = vmax.f32 %v1293, %v1450
        %v1558 = vmax.f32 %v1294, %v1464
        %v1559 = vmax.f32 %v1295, %v1478
        %v1560 = vmax.f32 %v1296, %v1492
        %v1561 = vmax.f32 %v1297, %v1506
        %v1562 = vmax.f32 %v1298, %v1520
        %v1563 = vmax.f32 %v1299, %v1534
        %v1564 = vmax.f32 %v1300, %v1548
        %v1565 = vadd.f32 %v1301, %v1450
        %v1566 = vadd.f32 %v1302, %v1464
        %v1567 = vadd.f32 %v1303, %v1478
        %v1568 = vadd.f32 %v1304, %v1492
        %v1569 = vadd.f32 %v1305, %v1506
        %v1570 = vadd.f32 %v1306, %v1520
        %v1571 = vadd.f32 %v1307, %v1534
        %v1572 = vadd.f32 %v1308, %v1548
        %v1573 = vld [vmem:[%s447 + $0x4] sm:$0x1]
        %v1574 = vld [vmem:[%s447 + $0xc] sm:$0x1]
        %v1575 = vld [vmem:[%s447 + $0x14] sm:$0x1]
        %v1576 = vld [vmem:[%s447 + $0x1c] sm:$0x1]
        %v1577 = vld [vmem:[%s447 + $0x24] sm:$0x1]
        %v1578 = vld [vmem:[%s447 + $0x2c] sm:$0x1]
        %v1579 = vld [vmem:[%s447 + $0x34] sm:$0x1]
        %v1580 = vld [vmem:[%s447 + $0x3c] sm:$0x1]
        %v1581 = vld [vmem:[%s447 + $0x44] sm:$0x1]
        %v1582 = vld [vmem:[%s447 + $0x4c] sm:$0x1]
        %v1583 = vld [vmem:[%s447 + $0x54] sm:$0x1]
        %v1584 = vld [vmem:[%s447 + $0x5c] sm:$0x1]
        %v1585 = vld [vmem:[%s447 + $0x64] sm:$0x1]
        %v1586 = vld [vmem:[%s447 + $0x6c] sm:$0x1]
        %v1587 = vld [vmem:[%s447 + $0x74] sm:$0x1]
        %v1588 = vld [vmem:[%s447 + $0x7c] sm:$0x1]
        %v1589 = vld [vmem:[%s447 + $0x84] sm:$0x1]
        %v1590 = vld [vmem:[%s447 + $0x8c] sm:$0x1]
        %v1591 = vld [vmem:[%s447 + $0x94] sm:$0x1]
        %v1592 = vld [vmem:[%s447 + $0x9c] sm:$0x1]
        %v1593 = vld [vmem:[%s447 + $0xa4] sm:$0x1]
        %v1594 = vld [vmem:[%s447 + $0xac] sm:$0x1]
        %v1595 = vld [vmem:[%s447 + $0xb4] sm:$0x1]
        %v1596 = vld [vmem:[%s447 + $0xbc] sm:$0x1]
        %v1597 = vld [vmem:[%s447 + $0xc4] sm:$0x1]
        %v1598 = vld [vmem:[%s447 + $0xcc] sm:$0x1]
        %v1599 = vld [vmem:[%s447 + $0xd4] sm:$0x1]
        %v1600 = vld [vmem:[%s447 + $0xdc] sm:$0x1]
        %v1601 = vld [vmem:[%s447 + $0xe4] sm:$0x1]
        %v1602 = vld [vmem:[%s447 + $0xec] sm:$0x1]
        %v1603 = vld [vmem:[%s447 + $0xf4] sm:$0x1]
        %v1604 = vld [vmem:[%s447 + $0xfc] sm:$0x1]
        %v1605 = vld [vmem:[%s447 + $0x104] sm:$0x1]
        %v1606 = vld [vmem:[%s447 + $0x10c] sm:$0x1]
        %v1607 = vld [vmem:[%s447 + $0x114] sm:$0x1]
        %v1608 = vld [vmem:[%s447 + $0x11c] sm:$0x1]
        %v1609 = vld [vmem:[%s447 + $0x124] sm:$0x1]
        %v1610 = vld [vmem:[%s447 + $0x12c] sm:$0x1]
        %v1611 = vld [vmem:[%s447 + $0x134] sm:$0x1]
        %v1612 = vld [vmem:[%s447 + $0x13c] sm:$0x1]
        %v1613 = vld [vmem:[%s447 + $0x144] sm:$0x1]
        %v1614 = vld [vmem:[%s447 + $0x14c] sm:$0x1]
        %v1615 = vld [vmem:[%s447 + $0x154] sm:$0x1]
        %v1616 = vld [vmem:[%s447 + $0x15c] sm:$0x1]
        %v1617 = vld [vmem:[%s447 + $0x164] sm:$0x1]
        %v1618 = vld [vmem:[%s447 + $0x16c] sm:$0x1]
        %v1619 = vld [vmem:[%s447 + $0x174] sm:$0x1]
        %v1620 = vld [vmem:[%s447 + $0x17c] sm:$0x1]
        %v1621 = vld [vmem:[%s447 + $0x184] sm:$0x1]
        %v1622 = vld [vmem:[%s447 + $0x18c] sm:$0x1]
        %v1623 = vld [vmem:[%s447 + $0x194] sm:$0x1]
        %v1624 = vld [vmem:[%s447 + $0x19c] sm:$0x1]
        %v1625 = vld [vmem:[%s447 + $0x1a4] sm:$0x1]
        %v1626 = vld [vmem:[%s447 + $0x1ac] sm:$0x1]
        %v1627 = vld [vmem:[%s447 + $0x1b4] sm:$0x1]
        %v1628 = vld [vmem:[%s447 + $0x1bc] sm:$0x1]
        %v1629 = vld [vmem:[%s447 + $0x1c4] sm:$0x1]
        %v1630 = vld [vmem:[%s447 + $0x1cc] sm:$0x1]
        %v1631 = vld [vmem:[%s447 + $0x1d4] sm:$0x1]
        %v1632 = vld [vmem:[%s447 + $0x1dc] sm:$0x1]
        %v1633 = vld [vmem:[%s447 + $0x1e4] sm:$0x1]
        %v1634 = vld [vmem:[%s447 + $0x1ec] sm:$0x1]
        %v1635 = vld [vmem:[%s447 + $0x1f4] sm:$0x1]
        %v1636 = vld [vmem:[%s447 + $0x1fc] sm:$0x1]
        %v1701 = vrot.slane %v1574, 7
        %v1702 = vsel %vm639, %v1701, %v1573
        %v1703 = vrot.slane %v1575, 6
        %v1704 = vsel %vm642, %v1703, %v1702
        %v1705 = vrot.slane %v1576, 5
        %v1706 = vsel %vm645, %v1705, %v1704
        %v1707 = vrot.slane %v1577, 4
        %v1708 = vsel %vm648, %v1707, %v1706
        %v1709 = vrot.slane %v1578, 3
        %v1710 = vsel %vm651, %v1709, %v1708
        %v1711 = vrot.slane %v1579, 2
        %v1712 = vsel %vm654, %v1711, %v1710
        %v1713 = vrot.slane %v1580, 1
        %v1714 = vsel %vm657, %v1713, %v1712
        %v1715 = vrot.slane %v1582, 7
        %v1716 = vsel %vm639, %v1715, %v1581
        %v1717 = vrot.slane %v1583, 6
        %v1718 = vsel %vm642, %v1717, %v1716
        %v1719 = vrot.slane %v1584, 5
        %v1720 = vsel %vm645, %v1719, %v1718
        %v1721 = vrot.slane %v1585, 4
        %v1722 = vsel %vm648, %v1721, %v1720
        %v1723 = vrot.slane %v1586, 3
        %v1724 = vsel %vm651, %v1723, %v1722
        %v1725 = vrot.slane %v1587, 2
        %v1726 = vsel %vm654, %v1725, %v1724
        %v1727 = vrot.slane %v1588, 1
        %v1728 = vsel %vm657, %v1727, %v1726
        %v1729 = vrot.slane %v1590, 7
        %v1730 = vsel %vm639, %v1729, %v1589
        %v1731 = vrot.slane %v1591, 6
        %v1732 = vsel %vm642, %v1731, %v1730
        %v1733 = vrot.slane %v1592, 5
        %v1734 = vsel %vm645, %v1733, %v1732
        %v1735 = vrot.slane %v1593, 4
        %v1736 = vsel %vm648, %v1735, %v1734
        %v1737 = vrot.slane %v1594, 3
        %v1738 = vsel %vm651, %v1737, %v1736
        %v1739 = vrot.slane %v1595, 2
        %v1740 = vsel %vm654, %v1739, %v1738
        %v1741 = vrot.slane %v1596, 1
        %v1742 = vsel %vm657, %v1741, %v1740
        %v1743 = vrot.slane %v1598, 7
        %v1744 = vsel %vm639, %v1743, %v1597
        %v1745 = vrot.slane %v1599, 6
        %v1746 = vsel %vm642, %v1745, %v1744
        %v1747 = vrot.slane %v1600, 5
        %v1748 = vsel %vm645, %v1747, %v1746
        %v1749 = vrot.slane %v1601, 4
        %v1750 = vsel %vm648, %v1749, %v1748
        %v1751 = vrot.slane %v1602, 3
        %v1752 = vsel %vm651, %v1751, %v1750
        %v1753 = vrot.slane %v1603, 2
        %v1754 = vsel %vm654, %v1753, %v1752
        %v1755 = vrot.slane %v1604, 1
        %v1756 = vsel %vm657, %v1755, %v1754
        %v1757 = vrot.slane %v1606, 7
        %v1758 = vsel %vm639, %v1757, %v1605
        %v1759 = vrot.slane %v1607, 6
        %v1760 = vsel %vm642, %v1759, %v1758
        %v1761 = vrot.slane %v1608, 5
        %v1762 = vsel %vm645, %v1761, %v1760
        %v1763 = vrot.slane %v1609, 4
        %v1764 = vsel %vm648, %v1763, %v1762
        %v1765 = vrot.slane %v1610, 3
        %v1766 = vsel %vm651, %v1765, %v1764
        %v1767 = vrot.slane %v1611, 2
        %v1768 = vsel %vm654, %v1767, %v1766
        %v1769 = vrot.slane %v1612, 1
        %v1770 = vsel %vm657, %v1769, %v1768
        %v1771 = vrot.slane %v1614, 7
        %v1772 = vsel %vm639, %v1771, %v1613
        %v1773 = vrot.slane %v1615, 6
        %v1774 = vsel %vm642, %v1773, %v1772
        %v1775 = vrot.slane %v1616, 5
        %v1776 = vsel %vm645, %v1775, %v1774
        %v1777 = vrot.slane %v1617, 4
        %v1778 = vsel %vm648, %v1777, %v1776
        %v1779 = vrot.slane %v1618, 3
        %v1780 = vsel %vm651, %v1779, %v1778
        %v1781 = vrot.slane %v1619, 2
        %v1782 = vsel %vm654, %v1781, %v1780
        %v1783 = vrot.slane %v1620, 1
        %v1784 = vsel %vm657, %v1783, %v1782
        %v1785 = vrot.slane %v1622, 7
        %v1786 = vsel %vm639, %v1785, %v1621
        %v1787 = vrot.slane %v1623, 6
        %v1788 = vsel %vm642, %v1787, %v1786
        %v1789 = vrot.slane %v1624, 5
        %v1790 = vsel %vm645, %v1789, %v1788
        %v1791 = vrot.slane %v1625, 4
        %v1792 = vsel %vm648, %v1791, %v1790
        %v1793 = vrot.slane %v1626, 3
        %v1794 = vsel %vm651, %v1793, %v1792
        %v1795 = vrot.slane %v1627, 2
        %v1796 = vsel %vm654, %v1795, %v1794
        %v1797 = vrot.slane %v1628, 1
        %v1798 = vsel %vm657, %v1797, %v1796
        %v1799 = vrot.slane %v1630, 7
        %v1800 = vsel %vm639, %v1799, %v1629
        %v1801 = vrot.slane %v1631, 6
        %v1802 = vsel %vm642, %v1801, %v1800
        %v1803 = vrot.slane %v1632, 5
        %v1804 = vsel %vm645, %v1803, %v1802
        %v1805 = vrot.slane %v1633, 4
        %v1806 = vsel %vm648, %v1805, %v1804
        %v1807 = vrot.slane %v1634, 3
        %v1808 = vsel %vm651, %v1807, %v1806
        %v1809 = vrot.slane %v1635, 2
        %v1810 = vsel %vm654, %v1809, %v1808
        %v1811 = vrot.slane %v1636, 1
        %v1812 = vsel %vm657, %v1811, %v1810
        %v1821 = vmax.f32 %v1557, %v1714
        %v1822 = vmax.f32 %v1558, %v1728
        %v1823 = vmax.f32 %v1559, %v1742
        %v1824 = vmax.f32 %v1560, %v1756
        %v1825 = vmax.f32 %v1561, %v1770
        %v1826 = vmax.f32 %v1562, %v1784
        %v1827 = vmax.f32 %v1563, %v1798
        %v1828 = vmax.f32 %v1564, %v1812
        %v1829 = vadd.f32 %v1565, %v1714
        %v1830 = vadd.f32 %v1566, %v1728
        %v1831 = vadd.f32 %v1567, %v1742
        %v1832 = vadd.f32 %v1568, %v1756
        %v1833 = vadd.f32 %v1569, %v1770
        %v1834 = vadd.f32 %v1570, %v1784
        %v1835 = vadd.f32 %v1571, %v1798
        %v1836 = vadd.f32 %v1572, %v1812
        %v1837 = vld [vmem:[%s447 + $0x5] sm:$0x1]
        %v1838 = vld [vmem:[%s447 + $0xd] sm:$0x1]
        %v1839 = vld [vmem:[%s447 + $0x15] sm:$0x1]
        %v1840 = vld [vmem:[%s447 + $0x1d] sm:$0x1]
        %v1841 = vld [vmem:[%s447 + $0x25] sm:$0x1]
        %v1842 = vld [vmem:[%s447 + $0x2d] sm:$0x1]
        %v1843 = vld [vmem:[%s447 + $0x35] sm:$0x1]
        %v1844 = vld [vmem:[%s447 + $0x3d] sm:$0x1]
        %v1845 = vld [vmem:[%s447 + $0x45] sm:$0x1]
        %v1846 = vld [vmem:[%s447 + $0x4d] sm:$0x1]
        %v1847 = vld [vmem:[%s447 + $0x55] sm:$0x1]
        %v1848 = vld [vmem:[%s447 + $0x5d] sm:$0x1]
        %v1849 = vld [vmem:[%s447 + $0x65] sm:$0x1]
        %v1850 = vld [vmem:[%s447 + $0x6d] sm:$0x1]
        %v1851 = vld [vmem:[%s447 + $0x75] sm:$0x1]
        %v1852 = vld [vmem:[%s447 + $0x7d] sm:$0x1]
        %v1853 = vld [vmem:[%s447 + $0x85] sm:$0x1]
        %v1854 = vld [vmem:[%s447 + $0x8d] sm:$0x1]
        %v1855 = vld [vmem:[%s447 + $0x95] sm:$0x1]
        %v1856 = vld [vmem:[%s447 + $0x9d] sm:$0x1]
        %v1857 = vld [vmem:[%s447 + $0xa5] sm:$0x1]
        %v1858 = vld [vmem:[%s447 + $0xad] sm:$0x1]
        %v1859 = vld [vmem:[%s447 + $0xb5] sm:$0x1]
        %v1860 = vld [vmem:[%s447 + $0xbd] sm:$0x1]
        %v1861 = vld [vmem:[%s447 + $0xc5] sm:$0x1]
        %v1862 = vld [vmem:[%s447 + $0xcd] sm:$0x1]
        %v1863 = vld [vmem:[%s447 + $0xd5] sm:$0x1]
        %v1864 = vld [vmem:[%s447 + $0xdd] sm:$0x1]
        %v1865 = vld [vmem:[%s447 + $0xe5] sm:$0x1]
        %v1866 = vld [vmem:[%s447 + $0xed] sm:$0x1]
        %v1867 = vld [vmem:[%s447 + $0xf5] sm:$0x1]
        %v1868 = vld [vmem:[%s447 + $0xfd] sm:$0x1]
        %v1869 = vld [vmem:[%s447 + $0x105] sm:$0x1]
        %v1870 = vld [vmem:[%s447 + $0x10d] sm:$0x1]
        %v1871 = vld [vmem:[%s447 + $0x115] sm:$0x1]
        %v1872 = vld [vmem:[%s447 + $0x11d] sm:$0x1]
        %v1873 = vld [vmem:[%s447 + $0x125] sm:$0x1]
        %v1874 = vld [vmem:[%s447 + $0x12d] sm:$0x1]
        %v1875 = vld [vmem:[%s447 + $0x135] sm:$0x1]
        %v1876 = vld [vmem:[%s447 + $0x13d] sm:$0x1]
        %v1877 = vld [vmem:[%s447 + $0x145] sm:$0x1]
        %v1878 = vld [vmem:[%s447 + $0x14d] sm:$0x1]
        %v1879 = vld [vmem:[%s447 + $0x155] sm:$0x1]
        %v1880 = vld [vmem:[%s447 + $0x15d] sm:$0x1]
        %v1881 = vld [vmem:[%s447 + $0x165] sm:$0x1]
        %v1882 = vld [vmem:[%s447 + $0x16d] sm:$0x1]
        %v1883 = vld [vmem:[%s447 + $0x175] sm:$0x1]
        %v1884 = vld [vmem:[%s447 + $0x17d] sm:$0x1]
        %v1885 = vld [vmem:[%s447 + $0x185] sm:$0x1]
        %v1886 = vld [vmem:[%s447 + $0x18d] sm:$0x1]
        %v1887 = vld [vmem:[%s447 + $0x195] sm:$0x1]
        %v1888 = vld [vmem:[%s447 + $0x19d] sm:$0x1]
        %v1889 = vld [vmem:[%s447 + $0x1a5] sm:$0x1]
        %v1890 = vld [vmem:[%s447 + $0x1ad] sm:$0x1]
        %v1891 = vld [vmem:[%s447 + $0x1b5] sm:$0x1]
        %v1892 = vld [vmem:[%s447 + $0x1bd] sm:$0x1]
        %v1893 = vld [vmem:[%s447 + $0x1c5] sm:$0x1]
        %v1894 = vld [vmem:[%s447 + $0x1cd] sm:$0x1]
        %v1895 = vld [vmem:[%s447 + $0x1d5] sm:$0x1]
        %v1896 = vld [vmem:[%s447 + $0x1dd] sm:$0x1]
        %v1897 = vld [vmem:[%s447 + $0x1e5] sm:$0x1]
        %v1898 = vld [vmem:[%s447 + $0x1ed] sm:$0x1]
        %v1899 = vld [vmem:[%s447 + $0x1f5] sm:$0x1]
        %v1900 = vld [vmem:[%s447 + $0x1fd] sm:$0x1]
        %v1965 = vrot.slane %v1838, 7
        %v1966 = vsel %vm639, %v1965, %v1837
        %v1967 = vrot.slane %v1839, 6
        %v1968 = vsel %vm642, %v1967, %v1966
        %v1969 = vrot.slane %v1840, 5
        %v1970 = vsel %vm645, %v1969, %v1968
        %v1971 = vrot.slane %v1841, 4
        %v1972 = vsel %vm648, %v1971, %v1970
        %v1973 = vrot.slane %v1842, 3
        %v1974 = vsel %vm651, %v1973, %v1972
        %v1975 = vrot.slane %v1843, 2
        %v1976 = vsel %vm654, %v1975, %v1974
        %v1977 = vrot.slane %v1844, 1
        %v1978 = vsel %vm657, %v1977, %v1976
        %v1979 = vrot.slane %v1846, 7
        %v1980 = vsel %vm639, %v1979, %v1845
        %v1981 = vrot.slane %v1847, 6
        %v1982 = vsel %vm642, %v1981, %v1980
        %v1983 = vrot.slane %v1848, 5
        %v1984 = vsel %vm645, %v1983, %v1982
        %v1985 = vrot.slane %v1849, 4
        %v1986 = vsel %vm648, %v1985, %v1984
        %v1987 = vrot.slane %v1850, 3
        %v1988 = vsel %vm651, %v1987, %v1986
        %v1989 = vrot.slane %v1851, 2
        %v1990 = vsel %vm654, %v1989, %v1988
        %v1991 = vrot.slane %v1852, 1
        %v1992 = vsel %vm657, %v1991, %v1990
        %v1993 = vrot.slane %v1854, 7
        %v1994 = vsel %vm639, %v1993, %v1853
        %v1995 = vrot.slane %v1855, 6
        %v1996 = vsel %vm642, %v1995, %v1994
        %v1997 = vrot.slane %v1856, 5
        %v1998 = vsel %vm645, %v1997, %v1996
        %v1999 = vrot.slane %v1857, 4
        %v2000 = vsel %vm648, %v1999, %v1998
        %v2001 = vrot.slane %v1858, 3
        %v2002 = vsel %vm651, %v2001, %v2000
        %v2003 = vrot.slane %v1859, 2
        %v2004 = vsel %vm654, %v2003, %v2002
        %v2005 = vrot.slane %v1860, 1
        %v2006 = vsel %vm657, %v2005, %v2004
        %v2007 = vrot.slane %v1862, 7
        %v2008 = vsel %vm639, %v2007, %v1861
        %v2009 = vrot.slane %v1863, 6
        %v2010 = vsel %vm642, %v2009, %v2008
        %v2011 = vrot.slane %v1864, 5
        %v2012 = vsel %vm645, %v2011, %v2010
        %v2013 = vrot.slane %v1865, 4
        %v2014 = vsel %vm648, %v2013, %v2012
        %v2015 = vrot.slane %v1866, 3
        %v2016 = vsel %vm651, %v2015, %v2014
        %v2017 = vrot.slane %v1867, 2
        %v2018 = vsel %vm654, %v2017, %v2016
        %v2019 = vrot.slane %v1868, 1
        %v2020 = vsel %vm657, %v2019, %v2018
        %v2021 = vrot.slane %v1870, 7
        %v2022 = vsel %vm639, %v2021, %v1869
        %v2023 = vrot.slane %v1871, 6
        %v2024 = vsel %vm642, %v2023, %v2022
        %v2025 = vrot.slane %v1872, 5
        %v2026 = vsel %vm645, %v2025, %v2024
        %v2027 = vrot.slane %v1873, 4
        %v2028 = vsel %vm648, %v2027, %v2026
        %v2029 = vrot.slane %v1874, 3
        %v2030 = vsel %vm651, %v2029, %v2028
        %v2031 = vrot.slane %v1875, 2
        %v2032 = vsel %vm654, %v2031, %v2030
        %v2033 = vrot.slane %v1876, 1
        %v2034 = vsel %vm657, %v2033, %v2032
        %v2035 = vrot.slane %v1878, 7
        %v2036 = vsel %vm639, %v2035, %v1877
        %v2037 = vrot.slane %v1879, 6
        %v2038 = vsel %vm642, %v2037, %v2036
        %v2039 = vrot.slane %v1880, 5
        %v2040 = vsel %vm645, %v2039, %v2038
        %v2041 = vrot.slane %v1881, 4
        %v2042 = vsel %vm648, %v2041, %v2040
        %v2043 = vrot.slane %v1882, 3
        %v2044 = vsel %vm651, %v2043, %v2042
        %v2045 = vrot.slane %v1883, 2
        %v2046 = vsel %vm654, %v2045, %v2044
        %v2047 = vrot.slane %v1884, 1
        %v2048 = vsel %vm657, %v2047, %v2046
        %v2049 = vrot.slane %v1886, 7
        %v2050 = vsel %vm639, %v2049, %v1885
        %v2051 = vrot.slane %v1887, 6
        %v2052 = vsel %vm642, %v2051, %v2050
        %v2053 = vrot.slane %v1888, 5
        %v2054 = vsel %vm645, %v2053, %v2052
        %v2055 = vrot.slane %v1889, 4
        %v2056 = vsel %vm648, %v2055, %v2054
        %v2057 = vrot.slane %v1890, 3
        %v2058 = vsel %vm651, %v2057, %v2056
        %v2059 = vrot.slane %v1891, 2
        %v2060 = vsel %vm654, %v2059, %v2058
        %v2061 = vrot.slane %v1892, 1
        %v2062 = vsel %vm657, %v2061, %v2060
        %v2063 = vrot.slane %v1894, 7
        %v2064 = vsel %vm639, %v2063, %v1893
        %v2065 = vrot.slane %v1895, 6
        %v2066 = vsel %vm642, %v2065, %v2064
        %v2067 = vrot.slane %v1896, 5
        %v2068 = vsel %vm645, %v2067, %v2066
        %v2069 = vrot.slane %v1897, 4
        %v2070 = vsel %vm648, %v2069, %v2068
        %v2071 = vrot.slane %v1898, 3
        %v2072 = vsel %vm651, %v2071, %v2070
        %v2073 = vrot.slane %v1899, 2
        %v2074 = vsel %vm654, %v2073, %v2072
        %v2075 = vrot.slane %v1900, 1
        %v2076 = vsel %vm657, %v2075, %v2074
        %v2085 = vmax.f32 %v1821, %v1978
        %v2086 = vmax.f32 %v1822, %v1992
        %v2087 = vmax.f32 %v1823, %v2006
        %v2088 = vmax.f32 %v1824, %v2020
        %v2089 = vmax.f32 %v1825, %v2034
        %v2090 = vmax.f32 %v1826, %v2048
        %v2091 = vmax.f32 %v1827, %v2062
        %v2092 = vmax.f32 %v1828, %v2076
        %v2093 = vadd.f32 %v1829, %v1978
        %v2094 = vadd.f32 %v1830, %v1992
        %v2095 = vadd.f32 %v1831, %v2006
        %v2096 = vadd.f32 %v1832, %v2020
        %v2097 = vadd.f32 %v1833, %v2034
        %v2098 = vadd.f32 %v1834, %v2048
        %v2099 = vadd.f32 %v1835, %v2062
        %v2100 = vadd.f32 %v1836, %v2076
        %v2101 = vld [vmem:[%s447 + $0x6] sm:$0x1]
        %v2102 = vld [vmem:[%s447 + $0xe] sm:$0x1]
        %v2103 = vld [vmem:[%s447 + $0x16] sm:$0x1]
        %v2104 = vld [vmem:[%s447 + $0x1e] sm:$0x1]
        %v2105 = vld [vmem:[%s447 + $0x26] sm:$0x1]
        %v2106 = vld [vmem:[%s447 + $0x2e] sm:$0x1]
        %v2107 = vld [vmem:[%s447 + $0x36] sm:$0x1]
        %v2108 = vld [vmem:[%s447 + $0x3e] sm:$0x1]
        %v2109 = vld [vmem:[%s447 + $0x46] sm:$0x1]
        %v2110 = vld [vmem:[%s447 + $0x4e] sm:$0x1]
        %v2111 = vld [vmem:[%s447 + $0x56] sm:$0x1]
        %v2112 = vld [vmem:[%s447 + $0x5e] sm:$0x1]
        %v2113 = vld [vmem:[%s447 + $0x66] sm:$0x1]
        %v2114 = vld [vmem:[%s447 + $0x6e] sm:$0x1]
        %v2115 = vld [vmem:[%s447 + $0x76] sm:$0x1]
        %v2116 = vld [vmem:[%s447 + $0x7e] sm:$0x1]
        %v2117 = vld [vmem:[%s447 + $0x86] sm:$0x1]
        %v2118 = vld [vmem:[%s447 + $0x8e] sm:$0x1]
        %v2119 = vld [vmem:[%s447 + $0x96] sm:$0x1]
        %v2120 = vld [vmem:[%s447 + $0x9e] sm:$0x1]
        %v2121 = vld [vmem:[%s447 + $0xa6] sm:$0x1]
        %v2122 = vld [vmem:[%s447 + $0xae] sm:$0x1]
        %v2123 = vld [vmem:[%s447 + $0xb6] sm:$0x1]
        %v2124 = vld [vmem:[%s447 + $0xbe] sm:$0x1]
        %v2125 = vld [vmem:[%s447 + $0xc6] sm:$0x1]
        %v2126 = vld [vmem:[%s447 + $0xce] sm:$0x1]
        %v2127 = vld [vmem:[%s447 + $0xd6] sm:$0x1]
        %v2128 = vld [vmem:[%s447 + $0xde] sm:$0x1]
        %v2129 = vld [vmem:[%s447 + $0xe6] sm:$0x1]
        %v2130 = vld [vmem:[%s447 + $0xee] sm:$0x1]
        %v2131 = vld [vmem:[%s447 + $0xf6] sm:$0x1]
        %v2132 = vld [vmem:[%s447 + $0xfe] sm:$0x1]
        %v2133 = vld [vmem:[%s447 + $0x106] sm:$0x1]
        %v2134 = vld [vmem:[%s447 + $0x10e] sm:$0x1]
        %v2135 = vld [vmem:[%s447 + $0x116] sm:$0x1]
        %v2136 = vld [vmem:[%s447 + $0x11e] sm:$0x1]
        %v2137 = vld [vmem:[%s447 + $0x126] sm:$0x1]
        %v2138 = vld [vmem:[%s447 + $0x12e] sm:$0x1]
        %v2139 = vld [vmem:[%s447 + $0x136] sm:$0x1]
        %v2140 = vld [vmem:[%s447 + $0x13e] sm:$0x1]
        %v2141 = vld [vmem:[%s447 + $0x146] sm:$0x1]
        %v2142 = vld [vmem:[%s447 + $0x14e] sm:$0x1]
        %v2143 = vld [vmem:[%s447 + $0x156] sm:$0x1]
        %v2144 = vld [vmem:[%s447 + $0x15e] sm:$0x1]
        %v2145 = vld [vmem:[%s447 + $0x166] sm:$0x1]
        %v2146 = vld [vmem:[%s447 + $0x16e] sm:$0x1]
        %v2147 = vld [vmem:[%s447 + $0x176] sm:$0x1]
        %v2148 = vld [vmem:[%s447 + $0x17e] sm:$0x1]
        %v2149 = vld [vmem:[%s447 + $0x186] sm:$0x1]
        %v2150 = vld [vmem:[%s447 + $0x18e] sm:$0x1]
        %v2151 = vld [vmem:[%s447 + $0x196] sm:$0x1]
        %v2152 = vld [vmem:[%s447 + $0x19e] sm:$0x1]
        %v2153 = vld [vmem:[%s447 + $0x1a6] sm:$0x1]
        %v2154 = vld [vmem:[%s447 + $0x1ae] sm:$0x1]
        %v2155 = vld [vmem:[%s447 + $0x1b6] sm:$0x1]
        %v2156 = vld [vmem:[%s447 + $0x1be] sm:$0x1]
        %v2157 = vld [vmem:[%s447 + $0x1c6] sm:$0x1]
        %v2158 = vld [vmem:[%s447 + $0x1ce] sm:$0x1]
        %v2159 = vld [vmem:[%s447 + $0x1d6] sm:$0x1]
        %v2160 = vld [vmem:[%s447 + $0x1de] sm:$0x1]
        %v2161 = vld [vmem:[%s447 + $0x1e6] sm:$0x1]
        %v2162 = vld [vmem:[%s447 + $0x1ee] sm:$0x1]
        %v2163 = vld [vmem:[%s447 + $0x1f6] sm:$0x1]
        %v2164 = vld [vmem:[%s447 + $0x1fe] sm:$0x1]
        %v2229 = vrot.slane %v2102, 7
        %v2230 = vsel %vm639, %v2229, %v2101
        %v2231 = vrot.slane %v2103, 6
        %v2232 = vsel %vm642, %v2231, %v2230
        %v2233 = vrot.slane %v2104, 5
        %v2234 = vsel %vm645, %v2233, %v2232
        %v2235 = vrot.slane %v2105, 4
        %v2236 = vsel %vm648, %v2235, %v2234
        %v2237 = vrot.slane %v2106, 3
        %v2238 = vsel %vm651, %v2237, %v2236
        %v2239 = vrot.slane %v2107, 2
        %v2240 = vsel %vm654, %v2239, %v2238
        %v2241 = vrot.slane %v2108, 1
        %v2242 = vsel %vm657, %v2241, %v2240
        %v2243 = vrot.slane %v2110, 7
        %v2244 = vsel %vm639, %v2243, %v2109
        %v2245 = vrot.slane %v2111, 6
        %v2246 = vsel %vm642, %v2245, %v2244
        %v2247 = vrot.slane %v2112, 5
        %v2248 = vsel %vm645, %v2247, %v2246
        %v2249 = vrot.slane %v2113, 4
        %v2250 = vsel %vm648, %v2249, %v2248
        %v2251 = vrot.slane %v2114, 3
        %v2252 = vsel %vm651, %v2251, %v2250
        %v2253 = vrot.slane %v2115, 2
        %v2254 = vsel %vm654, %v2253, %v2252
        %v2255 = vrot.slane %v2116, 1
        %v2256 = vsel %vm657, %v2255, %v2254
        %v2257 = vrot.slane %v2118, 7
        %v2258 = vsel %vm639, %v2257, %v2117
        %v2259 = vrot.slane %v2119, 6
        %v2260 = vsel %vm642, %v2259, %v2258
        %v2261 = vrot.slane %v2120, 5
        %v2262 = vsel %vm645, %v2261, %v2260
        %v2263 = vrot.slane %v2121, 4
        %v2264 = vsel %vm648, %v2263, %v2262
        %v2265 = vrot.slane %v2122, 3
        %v2266 = vsel %vm651, %v2265, %v2264
        %v2267 = vrot.slane %v2123, 2
        %v2268 = vsel %vm654, %v2267, %v2266
        %v2269 = vrot.slane %v2124, 1
        %v2270 = vsel %vm657, %v2269, %v2268
        %v2271 = vrot.slane %v2126, 7
        %v2272 = vsel %vm639, %v2271, %v2125
        %v2273 = vrot.slane %v2127, 6
        %v2274 = vsel %vm642, %v2273, %v2272
        %v2275 = vrot.slane %v2128, 5
        %v2276 = vsel %vm645, %v2275, %v2274
        %v2277 = vrot.slane %v2129, 4
        %v2278 = vsel %vm648, %v2277, %v2276
        %v2279 = vrot.slane %v2130, 3
        %v2280 = vsel %vm651, %v2279, %v2278
        %v2281 = vrot.slane %v2131, 2
        %v2282 = vsel %vm654, %v2281, %v2280
        %v2283 = vrot.slane %v2132, 1
        %v2284 = vsel %vm657, %v2283, %v2282
        %v2285 = vrot.slane %v2134, 7
        %v2286 = vsel %vm639, %v2285, %v2133
        %v2287 = vrot.slane %v2135, 6
        %v2288 = vsel %vm642, %v2287, %v2286
        %v2289 = vrot.slane %v2136, 5
        %v2290 = vsel %vm645, %v2289, %v2288
        %v2291 = vrot.slane %v2137, 4
        %v2292 = vsel %vm648, %v2291, %v2290
        %v2293 = vrot.slane %v2138, 3
        %v2294 = vsel %vm651, %v2293, %v2292
        %v2295 = vrot.slane %v2139, 2
        %v2296 = vsel %vm654, %v2295, %v2294
        %v2297 = vrot.slane %v2140, 1
        %v2298 = vsel %vm657, %v2297, %v2296
        %v2299 = vrot.slane %v2142, 7
        %v2300 = vsel %vm639, %v2299, %v2141
        %v2301 = vrot.slane %v2143, 6
        %v2302 = vsel %vm642, %v2301, %v2300
        %v2303 = vrot.slane %v2144, 5
        %v2304 = vsel %vm645, %v2303, %v2302
        %v2305 = vrot.slane %v2145, 4
        %v2306 = vsel %vm648, %v2305, %v2304
        %v2307 = vrot.slane %v2146, 3
        %v2308 = vsel %vm651, %v2307, %v2306
        %v2309 = vrot.slane %v2147, 2
        %v2310 = vsel %vm654, %v2309, %v2308
        %v2311 = vrot.slane %v2148, 1
        %v2312 = vsel %vm657, %v2311, %v2310
        %v2313 = vrot.slane %v2150, 7
        %v2314 = vsel %vm639, %v2313, %v2149
        %v2315 = vrot.slane %v2151, 6
        %v2316 = vsel %vm642, %v2315, %v2314
        %v2317 = vrot.slane %v2152, 5
        %v2318 = vsel %vm645, %v2317, %v2316
        %v2319 = vrot.slane %v2153, 4
        %v2320 = vsel %vm648, %v2319, %v2318
        %v2321 = vrot.slane %v2154, 3
        %v2322 = vsel %vm651, %v2321, %v2320
        %v2323 = vrot.slane %v2155, 2
        %v2324 = vsel %vm654, %v2323, %v2322
        %v2325 = vrot.slane %v2156, 1
        %v2326 = vsel %vm657, %v2325, %v2324
        %v2327 = vrot.slane %v2158, 7
        %v2328 = vsel %vm639, %v2327, %v2157
        %v2329 = vrot.slane %v2159, 6
        %v2330 = vsel %vm642, %v2329, %v2328
        %v2331 = vrot.slane %v2160, 5
        %v2332 = vsel %vm645, %v2331, %v2330
        %v2333 = vrot.slane %v2161, 4
        %v2334 = vsel %vm648, %v2333, %v2332
        %v2335 = vrot.slane %v2162, 3
        %v2336 = vsel %vm651, %v2335, %v2334
        %v2337 = vrot.slane %v2163, 2
        %v2338 = vsel %vm654, %v2337, %v2336
        %v2339 = vrot.slane %v2164, 1
        %v2340 = vsel %vm657, %v2339, %v2338
        %v2349 = vmax.f32 %v2085, %v2242
        %v2350 = vmax.f32 %v2086, %v2256
        %v2351 = vmax.f32 %v2087, %v2270
        %v2352 = vmax.f32 %v2088, %v2284
        %v2353 = vmax.f32 %v2089, %v2298
        %v2354 = vmax.f32 %v2090, %v2312
        %v2355 = vmax.f32 %v2091, %v2326
        %v2356 = vmax.f32 %v2092, %v2340
        %v2357 = vadd.f32 %v2093, %v2242
        %v2358 = vadd.f32 %v2094, %v2256
        %v2359 = vadd.f32 %v2095, %v2270
        %v2360 = vadd.f32 %v2096, %v2284
        %v2361 = vadd.f32 %v2097, %v2298
        %v2362 = vadd.f32 %v2098, %v2312
        %v2363 = vadd.f32 %v2099, %v2326
        %v2364 = vadd.f32 %v2100, %v2340
        %v2365 = vld [vmem:[%s447 + $0x7] sm:$0x1]
        %v2366 = vld [vmem:[%s447 + $0xf] sm:$0x1]
        %v2367 = vld [vmem:[%s447 + $0x17] sm:$0x1]
        %v2368 = vld [vmem:[%s447 + $0x1f] sm:$0x1]
        %v2369 = vld [vmem:[%s447 + $0x27] sm:$0x1]
        %v2370 = vld [vmem:[%s447 + $0x2f] sm:$0x1]
        %v2371 = vld [vmem:[%s447 + $0x37] sm:$0x1]
        %v2372 = vld [vmem:[%s447 + $0x3f] sm:$0x1]
        %v2373 = vld [vmem:[%s447 + $0x47] sm:$0x1]
        %v2374 = vld [vmem:[%s447 + $0x4f] sm:$0x1]
        %v2375 = vld [vmem:[%s447 + $0x57] sm:$0x1]
        %v2376 = vld [vmem:[%s447 + $0x5f] sm:$0x1]
        %v2377 = vld [vmem:[%s447 + $0x67] sm:$0x1]
        %v2378 = vld [vmem:[%s447 + $0x6f] sm:$0x1]
        %v2379 = vld [vmem:[%s447 + $0x77] sm:$0x1]
        %v2380 = vld [vmem:[%s447 + $0x7f] sm:$0x1]
        %v2381 = vld [vmem:[%s447 + $0x87] sm:$0x1]
        %v2382 = vld [vmem:[%s447 + $0x8f] sm:$0x1]
        %v2383 = vld [vmem:[%s447 + $0x97] sm:$0x1]
        %v2384 = vld [vmem:[%s447 + $0x9f] sm:$0x1]
        %v2385 = vld [vmem:[%s447 + $0xa7] sm:$0x1]
        %v2386 = vld [vmem:[%s447 + $0xaf] sm:$0x1]
        %v2387 = vld [vmem:[%s447 + $0xb7] sm:$0x1]
        %v2388 = vld [vmem:[%s447 + $0xbf] sm:$0x1]
        %v2389 = vld [vmem:[%s447 + $0xc7] sm:$0x1]
        %v2390 = vld [vmem:[%s447 + $0xcf] sm:$0x1]
        %v2391 = vld [vmem:[%s447 + $0xd7] sm:$0x1]
        %v2392 = vld [vmem:[%s447 + $0xdf] sm:$0x1]
        %v2393 = vld [vmem:[%s447 + $0xe7] sm:$0x1]
        %v2394 = vld [vmem:[%s447 + $0xef] sm:$0x1]
        %v2395 = vld [vmem:[%s447 + $0xf7] sm:$0x1]
        %v2396 = vld [vmem:[%s447 + $0xff] sm:$0x1]
        %v2397 = vld [vmem:[%s447 + $0x107] sm:$0x1]
        %v2398 = vld [vmem:[%s447 + $0x10f] sm:$0x1]
        %v2399 = vld [vmem:[%s447 + $0x117] sm:$0x1]
        %v2400 = vld [vmem:[%s447 + $0x11f] sm:$0x1]
        %v2401 = vld [vmem:[%s447 + $0x127] sm:$0x1]
        %v2402 = vld [vmem:[%s447 + $0x12f] sm:$0x1]
        %v2403 = vld [vmem:[%s447 + $0x137] sm:$0x1]
        %v2404 = vld [vmem:[%s447 + $0x13f] sm:$0x1]
        %v2405 = vld [vmem:[%s447 + $0x147] sm:$0x1]
        %v2406 = vld [vmem:[%s447 + $0x14f] sm:$0x1]
        %v2407 = vld [vmem:[%s447 + $0x157] sm:$0x1]
        %v2408 = vld [vmem:[%s447 + $0x15f] sm:$0x1]
        %v2409 = vld [vmem:[%s447 + $0x167] sm:$0x1]
        %v2410 = vld [vmem:[%s447 + $0x16f] sm:$0x1]
        %v2411 = vld [vmem:[%s447 + $0x177] sm:$0x1]
        %v2412 = vld [vmem:[%s447 + $0x17f] sm:$0x1]
        %v2413 = vld [vmem:[%s447 + $0x187] sm:$0x1]
        %v2414 = vld [vmem:[%s447 + $0x18f] sm:$0x1]
        %v2415 = vld [vmem:[%s447 + $0x197] sm:$0x1]
        %v2416 = vld [vmem:[%s447 + $0x19f] sm:$0x1]
        %v2417 = vld [vmem:[%s447 + $0x1a7] sm:$0x1]
        %v2418 = vld [vmem:[%s447 + $0x1af] sm:$0x1]
        %v2419 = vld [vmem:[%s447 + $0x1b7] sm:$0x1]
        %v2420 = vld [vmem:[%s447 + $0x1bf] sm:$0x1]
        %v2421 = vld [vmem:[%s447 + $0x1c7] sm:$0x1]
        %v2422 = vld [vmem:[%s447 + $0x1cf] sm:$0x1]
        %v2423 = vld [vmem:[%s447 + $0x1d7] sm:$0x1]
        %v2424 = vld [vmem:[%s447 + $0x1df] sm:$0x1]
        %v2425 = vld [vmem:[%s447 + $0x1e7] sm:$0x1]
        %v2426 = vld [vmem:[%s447 + $0x1ef] sm:$0x1]
        %v2427 = vld [vmem:[%s447 + $0x1f7] sm:$0x1]
        %v2428 = vld [vmem:[%s447 + $0x1ff] sm:$0x1]
        %v2493 = vrot.slane %v2366, 7
        %v2494 = vsel %vm639, %v2493, %v2365
        %v2495 = vrot.slane %v2367, 6
        %v2496 = vsel %vm642, %v2495, %v2494
        %v2497 = vrot.slane %v2368, 5
        %v2498 = vsel %vm645, %v2497, %v2496
        %v2499 = vrot.slane %v2369, 4
        %v2500 = vsel %vm648, %v2499, %v2498
        %v2501 = vrot.slane %v2370, 3
        %v2502 = vsel %vm651, %v2501, %v2500
        %v2503 = vrot.slane %v2371, 2
        %v2504 = vsel %vm654, %v2503, %v2502
        %v2505 = vrot.slane %v2372, 1
        %v2506 = vsel %vm657, %v2505, %v2504
        %v2507 = vrot.slane %v2374, 7
        %v2508 = vsel %vm639, %v2507, %v2373
        %v2509 = vrot.slane %v2375, 6
        %v2510 = vsel %vm642, %v2509, %v2508
        %v2511 = vrot.slane %v2376, 5
        %v2512 = vsel %vm645, %v2511, %v2510
        %v2513 = vrot.slane %v2377, 4
        %v2514 = vsel %vm648, %v2513, %v2512
        %v2515 = vrot.slane %v2378, 3
        %v2516 = vsel %vm651, %v2515, %v2514
        %v2517 = vrot.slane %v2379, 2
        %v2518 = vsel %vm654, %v2517, %v2516
        %v2519 = vrot.slane %v2380, 1
        %v2520 = vsel %vm657, %v2519, %v2518
        %v2521 = vrot.slane %v2382, 7
        %v2522 = vsel %vm639, %v2521, %v2381
        %v2523 = vrot.slane %v2383, 6
        %v2524 = vsel %vm642, %v2523, %v2522
        %v2525 = vrot.slane %v2384, 5
        %v2526 = vsel %vm645, %v2525, %v2524
        %v2527 = vrot.slane %v2385, 4
        %v2528 = vsel %vm648, %v2527, %v2526
        %v2529 = vrot.slane %v2386, 3
        %v2530 = vsel %vm651, %v2529, %v2528
        %v2531 = vrot.slane %v2387, 2
        %v2532 = vsel %vm654, %v2531, %v2530
        %v2533 = vrot.slane %v2388, 1
        %v2534 = vsel %vm657, %v2533, %v2532
        %v2535 = vrot.slane %v2390, 7
        %v2536 = vsel %vm639, %v2535, %v2389
        %v2537 = vrot.slane %v2391, 6
        %v2538 = vsel %vm642, %v2537, %v2536
        %v2539 = vrot.slane %v2392, 5
        %v2540 = vsel %vm645, %v2539, %v2538
        %v2541 = vrot.slane %v2393, 4
        %v2542 = vsel %vm648, %v2541, %v2540
        %v2543 = vrot.slane %v2394, 3
        %v2544 = vsel %vm651, %v2543, %v2542
        %v2545 = vrot.slane %v2395, 2
        %v2546 = vsel %vm654, %v2545, %v2544
        %v2547 = vrot.slane %v2396, 1
        %v2548 = vsel %vm657, %v2547, %v2546
        %v2549 = vrot.slane %v2398, 7
        %v2550 = vsel %vm639, %v2549, %v2397
        %v2551 = vrot.slane %v2399, 6
        %v2552 = vsel %vm642, %v2551, %v2550
        %v2553 = vrot.slane %v2400, 5
        %v2554 = vsel %vm645, %v2553, %v2552
        %v2555 = vrot.slane %v2401, 4
        %v2556 = vsel %vm648, %v2555, %v2554
        %v2557 = vrot.slane %v2402, 3
        %v2558 = vsel %vm651, %v2557, %v2556
        %v2559 = vrot.slane %v2403, 2
        %v2560 = vsel %vm654, %v2559, %v2558
        %v2561 = vrot.slane %v2404, 1
        %v2562 = vsel %vm657, %v2561, %v2560
        %v2563 = vrot.slane %v2406, 7
        %v2564 = vsel %vm639, %v2563, %v2405
        %v2565 = vrot.slane %v2407, 6
        %v2566 = vsel %vm642, %v2565, %v2564
        %v2567 = vrot.slane %v2408, 5
        %v2568 = vsel %vm645, %v2567, %v2566
        %v2569 = vrot.slane %v2409, 4
        %v2570 = vsel %vm648, %v2569, %v2568
        %v2571 = vrot.slane %v2410, 3
        %v2572 = vsel %vm651, %v2571, %v2570
        %v2573 = vrot.slane %v2411, 2
        %v2574 = vsel %vm654, %v2573, %v2572
        %v2575 = vrot.slane %v2412, 1
        %v2576 = vsel %vm657, %v2575, %v2574
        %v2577 = vrot.slane %v2414, 7
        %v2578 = vsel %vm639, %v2577, %v2413
        %v2579 = vrot.slane %v2415, 6
        %v2580 = vsel %vm642, %v2579, %v2578
        %v2581 = vrot.slane %v2416, 5
        %v2582 = vsel %vm645, %v2581, %v2580
        %v2583 = vrot.slane %v2417, 4
        %v2584 = vsel %vm648, %v2583, %v2582
        %v2585 = vrot.slane %v2418, 3
        %v2586 = vsel %vm651, %v2585, %v2584
        %v2587 = vrot.slane %v2419, 2
        %v2588 = vsel %vm654, %v2587, %v2586
        %v2589 = vrot.slane %v2420, 1
        %v2590 = vsel %vm657, %v2589, %v2588
        %v2591 = vrot.slane %v2422, 7
        %v2592 = vsel %vm639, %v2591, %v2421
        %v2593 = vrot.slane %v2423, 6
        %v2594 = vsel %vm642, %v2593, %v2592
        %v2595 = vrot.slane %v2424, 5
        %v2596 = vsel %vm645, %v2595, %v2594
        %v2597 = vrot.slane %v2425, 4
        %v2598 = vsel %vm648, %v2597, %v2596
        %v2599 = vrot.slane %v2426, 3
        %v2600 = vsel %vm651, %v2599, %v2598
        %v2601 = vrot.slane %v2427, 2
        %v2602 = vsel %vm654, %v2601, %v2600
        %v2603 = vrot.slane %v2428, 1
        %v2604 = vsel %vm657, %v2603, %v2602
        %v2613 = vmax.f32 %v2349, %v2506
        %v2614 = vmax.f32 %v2350, %v2520
        %v2615 = vmax.f32 %v2351, %v2534
        %v2616 = vmax.f32 %v2352, %v2548
        %v2617 = vmax.f32 %v2353, %v2562
        %v2618 = vmax.f32 %v2354, %v2576
        %v2619 = vmax.f32 %v2355, %v2590
        %v2620 = vmax.f32 %v2356, %v2604
        %v2621 = vadd.f32 %v2357, %v2506
        %v2622 = vadd.f32 %v2358, %v2520
        %v2623 = vadd.f32 %v2359, %v2534
        %v2624 = vadd.f32 %v2360, %v2548
        %v2625 = vadd.f32 %v2361, %v2562
        %v2626 = vadd.f32 %v2362, %v2576
        %v2627 = vadd.f32 %v2363, %v2590
        %v2628 = vadd.f32 %v2364, %v2604
        %vm2629 = vcmask 130048
        %2630 = vst.msk [vmem:[#allocation2] sm:$0xff] %vm2629, %v2613
        %2631 = vst.msk [vmem:[#allocation2 + $0x8] sm:$0xff] %vm2629, %v2614
        %2632 = vst.msk [vmem:[#allocation2 + $0x10] sm:$0xff] %vm2629, %v2615
        %2633 = vst.msk [vmem:[#allocation2 + $0x18] sm:$0xff] %vm2629, %v2616
        %2634 = vst.msk [vmem:[#allocation2 + $0x20] sm:$0xff] %vm2629, %v2617
        %2635 = vst.msk [vmem:[#allocation2 + $0x28] sm:$0xff] %vm2629, %v2618
        %2636 = vst.msk [vmem:[#allocation2 + $0x30] sm:$0xff] %vm2629, %v2619
        %2637 = vst.msk [vmem:[#allocation2 + $0x38] sm:$0xff] %vm2629, %v2620
        %2638 = vst.msk [vmem:[#allocation3] sm:$0xff] %vm2629, %v2621
        %2639 = vst.msk [vmem:[#allocation3 + $0x8] sm:$0xff] %vm2629, %v2622
        %2640 = vst.msk [vmem:[#allocation3 + $0x10] sm:$0xff] %vm2629, %v2623
        %2641 = vst.msk [vmem:[#allocation3 + $0x18] sm:$0xff] %vm2629, %v2624
        %2642 = vst.msk [vmem:[#allocation3 + $0x20] sm:$0xff] %vm2629, %v2625
        %2643 = vst.msk [vmem:[#allocation3 + $0x28] sm:$0xff] %vm2629, %v2626
        %2644 = vst.msk [vmem:[#allocation3 + $0x30] sm:$0xff] %vm2629, %v2627
        %2645 = vst.msk [vmem:[#allocation3 + $0x38] sm:$0xff] %vm2629, %v2628
        %p2646 = scmp.eq.s32.totalorder %s19, 1
        // Predicated region
        $region75: #{wattention.1} parent=65 // pred_check
          %p2647 = pneg %p2646
        $region76: #{wattention.1} parent=65 // pred_check_branch
          %2649 = sbr.rel (%p2647) target = $region78
        $region77: #{wattention.1} parent=65 // pred_region
          %v2650 = vld [vmem:[#allocation2] sm:$0xff]
          %v2651 = vld [vmem:[#allocation2 + $0x8] sm:$0xff]
          %v2652 = vld [vmem:[#allocation2 + $0x10] sm:$0xff]
          %v2653 = vld [vmem:[#allocation2 + $0x18] sm:$0xff]
          %v2654 = vld [vmem:[#allocation2 + $0x20] sm:$0xff]
          %v2655 = vld [vmem:[#allocation2 + $0x28] sm:$0xff]
          %v2656 = vld [vmem:[#allocation2 + $0x30] sm:$0xff]
          %v2657 = vld [vmem:[#allocation2 + $0x38] sm:$0xff]
          %v2658 = vld [vmem:[#allocation3] sm:$0xff]
          %v2659 = vld [vmem:[#allocation3 + $0x8] sm:$0xff]
          %v2660 = vld [vmem:[#allocation3 + $0x10] sm:$0xff]
          %v2661 = vld [vmem:[#allocation3 + $0x18] sm:$0xff]
          %v2662 = vld [vmem:[#allocation3 + $0x20] sm:$0xff]
          %v2663 = vld [vmem:[#allocation3 + $0x28] sm:$0xff]
          %v2664 = vld [vmem:[#allocation3 + $0x30] sm:$0xff]
          %v2665 = vld [vmem:[#allocation3 + $0x38] sm:$0xff]
          %v2666 = vmul.f32 %v2658, 0.0625
          %v2667 = vmul.f32 %v2659, 0.0625
          %v2668 = vmul.f32 %v2660, 0.0625
          %v2669 = vmul.f32 %v2661, 0.0625
          %v2670 = vmul.f32 %v2662, 0.0625
          %v2671 = vmul.f32 %v2663, 0.0625
          %v2672 = vmul.f32 %v2664, 0.0625
          %v2673 = vmul.f32 %v2665, 0.0625
          %v2674 = vld [vmem:[%s1] sm:$0xf]
          %v2675 = vld [vmem:[%s2] sm:$0xff]
          %v2676 = vld [vmem:[%s2 + $0x8] sm:$0xff]
          %v2677 = vld [vmem:[%s2 + $0x10] sm:$0xff]
          %v2678 = vld [vmem:[%s2 + $0x18] sm:$0xff]
          %v2679 = vld [vmem:[%s2 + $0x20] sm:$0xff]
          %v2680 = vld [vmem:[%s2 + $0x28] sm:$0xff]
          %v2681 = vld [vmem:[%s2 + $0x30] sm:$0xff]
          %v2682 = vld [vmem:[%s2 + $0x38] sm:$0xff]
          %vm2683 = vcmask 523264
          %v2685 = vsel %vm2683, %v2674, 0
          %2687 = vmatprep.subr.mxu0 0.0
          %2688 = vmatpush1.msra.mxu0 %v2650
          %2689 = vmatprep.subr.mxu0 0.0
          %2690 = vmatpush1.msra.mxu0 %v2651
          %2691 = vmatprep.subr.mxu0 0.0
          %2692 = vmatpush1.msra.mxu0 %v2652
          %2693 = vmatprep.subr.mxu0 0.0
          %2694 = vmatpush1.msra.mxu0 %v2653
          %2695 = vmatprep.subr.mxu0 0.0
          %2696 = vmatpush1.msra.mxu0 %v2654
          %2697 = vmatprep.subr.mxu0 0.0
          %2698 = vmatpush1.msra.mxu0 %v2655
          %2699 = vmatprep.subr.mxu0 0.0
          %2700 = vmatpush1.msra.mxu0 %v2656
          %2701 = vmatprep.subr.mxu0 0.0
          %2702 = vmatpush1.msra.mxu0 %v2657
          %2703 = vmatprep.subr.mxu0 0.0
          %2704 = vmatpush1.msra.mxu0 0.0
          %2705 = vmatprep.subr.mxu0 0.0
          %2706 = vmatpush1.msra.mxu0 0.0
          %2707 = vmatprep.subr.mxu0 0.0
          %2708 = vmatpush1.msra.mxu0 0.0
          %2709 = vmatprep.subr.mxu0 0.0
          %2710 = vmatpush1.msra.mxu0 0.0
          %2711 = vmatprep.subr.mxu0 0.0
          %2712 = vmatpush1.msra.mxu0 0.0
          %2713 = vmatprep.subr.mxu0 0.0
          %2714 = vmatpush1.msra.mxu0 0.0
          %2715 = vmatprep.subr.mxu0 0.0
          %2716 = vmatpush1.msra.mxu0 0.0
          %2717 = vmatprep.subr.mxu0 0.0
          %2718 = vmatpush1.msra.mxu0 0.0
          %2719 = vmatprep.subr.mxu0 0.0
          %2720 = vmatpush1.msra.mxu0 0.0
          %2721 = vmatprep.subr.mxu0 0.0
          %2722 = vmatpush1.msra.mxu0 0.0
          %2723 = vmatprep.subr.mxu0 0.0
          %2724 = vmatpush1.msra.mxu0 0.0
          %2725 = vmatprep.subr.mxu0 0.0
          %2726 = vmatpush1.msra.mxu0 0.0
          %2727 = vmatprep.subr.mxu0 0.0
          %2728 = vmatpush1.msra.mxu0 0.0
          %2729 = vmatprep.subr.mxu0 0.0
          %2730 = vmatpush1.msra.mxu0 0.0
          %2731 = vmatprep.subr.mxu0 0.0
          %2732 = vmatpush1.msra.mxu0 0.0
          %2733 = vmatprep.subr.mxu0 0.0
          %2734 = vmatpush1.msra.mxu0 0.0
          %2735 = vmatprep.subr.mxu0 0.0
          %2736 = vmatpush1.msra.mxu0 0.0
          %2737 = vmatprep.subr.mxu0 0.0
          %2738 = vmatpush1.msra.mxu0 0.0
          %2739 = vmatprep.subr.mxu0 0.0
          %2740 = vmatpush1.msra.mxu0 0.0
          %2741 = vmatprep.subr.mxu0 0.0
          %2742 = vmatpush1.msra.mxu0 0.0
          %2743 = vmatprep.subr.mxu0 0.0
          %2744 = vmatpush1.msra.mxu0 0.0
          %2745 = vmatprep.subr.mxu0 0.0
          %2746 = vmatpush1.msra.mxu0 0.0
          %2747 = vmatprep.subr.mxu0 0.0
          %2748 = vmatpush1.msra.mxu0 0.0
          %2749 = vmatprep.subr.mxu0 0.0
          %2750 = vmatpush1.msra.mxu0 0.0
          %2751 = vmatprep.mubr.f32.mxu0 0.0
          %2752 = vmatmul.mubr.f32.gmra.mrb[0].mxu0 %v2685
          %v2753 = vpop.f32.mrb[0].mxu0
          %v2754 = vadd.f32 0.0, %v2753
          %v2755 = vpop.f32.mrb[0].mxu0
          %2756 = vdwg.mxu0
          %v2757 = vmax.f32 %v2754, 0.0
          %2758 = vmatprep.subr.mxu0 0.0
          %2759 = vmatpush1.msra.mxu0 %v2666
          %2760 = vmatprep.subr.mxu0 0.0
          %2761 = vmatpush1.msra.mxu0 %v2667
          %2762 = vmatprep.subr.mxu0 0.0
          %2763 = vmatpush1.msra.mxu0 %v2668
          %2764 = vmatprep.subr.mxu0 0.0
          %2765 = vmatpush1.msra.mxu0 %v2669
          %2766 = vmatprep.subr.mxu0 0.0
          %2767 = vmatpush1.msra.mxu0 %v2670
          %2768 = vmatprep.subr.mxu0 0.0
          %2769 = vmatpush1.msra.mxu0 %v2671
          %2770 = vmatprep.subr.mxu0 0.0
          %2771 = vmatpush1.msra.mxu0 %v2672
          %2772 = vmatprep.subr.mxu0 0.0
          %2773 = vmatpush1.msra.mxu0 %v2673
          %2774 = vmatprep.subr.mxu0 0.0
          %2775 = vmatpush1.msra.mxu0 0.0
          %2776 = vmatprep.subr.mxu0 0.0
          %2777 = vmatpush1.msra.mxu0 0.0
          %2778 = vmatprep.subr.mxu0 0.0
          %2779 = vmatpush1.msra.mxu0 0.0
          %2780 = vmatprep.subr.mxu0 0.0
          %2781 = vmatpush1.msra.mxu0 0.0
          %2782 = vmatprep.subr.mxu0 0.0
          %2783 = vmatpush1.msra.mxu0 0.0
          %2784 = vmatprep.subr.mxu0 0.0
          %2785 = vmatpush1.msra.mxu0 0.0
          %2786 = vmatprep.subr.mxu0 0.0
          %2787 = vmatpush1.msra.mxu0 0.0
          %2788 = vmatprep.subr.mxu0 0.0
          %2789 = vmatpush1.msra.mxu0 0.0
          %2790 = vmatprep.subr.mxu0 0.0
          %2791 = vmatpush1.msra.mxu0 0.0
          %2792 = vmatprep.subr.mxu0 0.0
          %2793 = vmatpush1.msra.mxu0 0.0
          %2794 = vmatprep.subr.mxu0 0.0
          %2795 = vmatpush1.msra.mxu0 0.0
          %2796 = vmatprep.subr.mxu0 0.0
          %2797 = vmatpush1.msra.mxu0 0.0
          %2798 = vmatprep.subr.mxu0 0.0
          %2799 = vmatpush1.msra.mxu0 0.0
          %2800 = vmatprep.subr.mxu0 0.0
          %2801 = vmatpush1.msra.mxu0 0.0
          %2802 = vmatprep.subr.mxu0 0.0
          %2803 = vmatpush1.msra.mxu0 0.0
          %2804 = vmatprep.subr.mxu0 0.0
          %2805 = vmatpush1.msra.mxu0 0.0
          %2806 = vmatprep.subr.mxu0 0.0
          %2807 = vmatpush1.msra.mxu0 0.0
          %2808 = vmatprep.subr.mxu0 0.0
          %2809 = vmatpush1.msra.mxu0 0.0
          %2810 = vmatprep.subr.mxu0 0.0
          %2811 = vmatpush1.msra.mxu0 0.0
          %2812 = vmatprep.subr.mxu0 0.0
          %2813 = vmatpush1.msra.mxu0 0.0
          %2814 = vmatprep.subr.mxu0 0.0
          %2815 = vmatpush1.msra.mxu0 0.0
          %2816 = vmatprep.subr.mxu0 0.0
          %2817 = vmatpush1.msra.mxu0 0.0
          %2818 = vmatprep.subr.mxu0 0.0
          %2819 = vmatpush1.msra.mxu0 0.0
          %2820 = vmatprep.subr.mxu0 0.0
          %2821 = vmatpush1.msra.mxu0 0.0
          %2822 = vmatprep.mubr.f32.mxu0 0.0
          %2823 = vmatmul.mubr.f32.gmra.mrb[0].mxu0 %v2685
          %v2824 = vpop.f32.mrb[0].mxu0
          %v2825 = vadd.f32 0.0, %v2824
          %v2826 = vpop.f32.mrb[0].mxu0
          %2827 = vdwg.mxu0
          %v2828 = vmax.f32 %v2825, 0.0
          %v2829 = vadd.f32 %v2757, %v2828
          %vm2830 = vcmask 31744
          %v2832 = vsel %vm2830, %v2675, 0
          %v2835 = vsel %vm2830, %v2676, 0
          %v2838 = vsel %vm2830, %v2677, 0
          %v2841 = vsel %vm2830, %v2678, 0
          %v2844 = vsel %vm2830, %v2679, 0
          %v2847 = vsel %vm2830, %v2680, 0
          %v2850 = vsel %vm2830, %v2681, 0
          %v2853 = vsel %vm2830, %v2682, 0
          %vm2855 = vcmask 1043456
          %v2857 = vsel %vm2855, %v2829, 0
          %2859 = vmatprep.subr.mxu0 0.0
          %2860 = vmatpush1.msra.mxu0 %v2857
          %2861 = vmatprep.subr.mxu0 0.0
          %2862 = vmatpush1.msra.mxu0 0.0
          %2863 = vmatprep.subr.mxu0 0.0
          %2864 = vmatpush1.msra.mxu0 0.0
          %2865 = vmatprep.subr.mxu0 0.0
          %2866 = vmatpush1.msra.mxu0 0.0
          %2867 = vmatprep.subr.mxu0 0.0
          %2868 = vmatpush1.msra.mxu0 0.0
          %2869 = vmatprep.subr.mxu0 0.0
          %2870 = vmatpush1.msra.mxu0 0.0
          %2871 = vmatprep.subr.mxu0 0.0
          %2872 = vmatpush1.msra.mxu0 0.0
          %2873 = vmatprep.subr.mxu0 0.0
          %2874 = vmatpush1.msra.mxu0 0.0
          %2875 = vmatprep.subr.mxu0 0.0
          %2876 = vmatpush1.msra.mxu0 0.0
          %2877 = vmatprep.subr.mxu0 0.0
          %2878 = vmatpush1.msra.mxu0 0.0
          %2879 = vmatprep.subr.mxu0 0.0
          %2880 = vmatpush1.msra.mxu0 0.0
          %2881 = vmatprep.subr.mxu0 0.0
          %2882 = vmatpush1.msra.mxu0 0.0
          %2883 = vmatprep.subr.mxu0 0.0
          %2884 = vmatpush1.msra.mxu0 0.0
          %2885 = vmatprep.subr.mxu0 0.0
          %2886 = vmatpush1.msra.mxu0 0.0
          %2887 = vmatprep.subr.mxu0 0.0
          %2888 = vmatpush1.msra.mxu0 0.0
          %2889 = vmatprep.subr.mxu0 0.0
          %2890 = vmatpush1.msra.mxu0 0.0
          %2891 = vmatprep.subr.mxu0 0.0
          %2892 = vmatpush1.msra.mxu0 0.0
          %2893 = vmatprep.subr.mxu0 0.0
          %2894 = vmatpush1.msra.mxu0 0.0
          %2895 = vmatprep.subr.mxu0 0.0
          %2896 = vmatpush1.msra.mxu0 0.0
          %2897 = vmatprep.subr.mxu0 0.0
          %2898 = vmatpush1.msra.mxu0 0.0
          %2899 = vmatprep.subr.mxu0 0.0
          %2900 = vmatpush1.msra.mxu0 0.0
          %2901 = vmatprep.subr.mxu0 0.0
          %2902 = vmatpush1.msra.mxu0 0.0
          %2903 = vmatprep.subr.mxu0 0.0
          %2904 = vmatpush1.msra.mxu0 0.0
          %2905 = vmatprep.subr.mxu0 0.0
          %2906 = vmatpush1.msra.mxu0 0.0
          %2907 = vmatprep.subr.mxu0 0.0
          %2908 = vmatpush1.msra.mxu0 0.0
          %2909 = vmatprep.subr.mxu0 0.0
          %2910 = vmatpush1.msra.mxu0 0.0
          %2911 = vmatprep.subr.mxu0 0.0
          %2912 = vmatpush1.msra.mxu0 0.0
          %2913 = vmatprep.subr.mxu0 0.0
          %2914 = vmatpush1.msra.mxu0 0.0
          %2915 = vmatprep.subr.mxu0 0.0
          %2916 = vmatpush1.msra.mxu0 0.0
          %2917 = vmatprep.subr.mxu0 0.0
          %2918 = vmatpush1.msra.mxu0 0.0
          %2919 = vmatprep.subr.mxu0 0.0
          %2920 = vmatpush1.msra.mxu0 0.0
          %2921 = vmatprep.subr.mxu0 0.0
          %2922 = vmatpush1.msra.mxu0 0.0
          %2923 = vmatprep.mubr.f32.mxu0 0.0
          %2924 = vmatmul.mubr.f32.gmra.mrb[0].mxu0 %v2832
          %v2925 = vpop.f32.mrb[0].mxu0
          %v2926 = vadd.f32 0.0, %v2925
          %v2927 = vpop.f32.mrb[0].mxu0
          %2928 = vmatprep.mubr.f32.mxu0 0.0
          %2929 = vmatmul.mubr.f32.gmra.mrb[0].mxu0 %v2835
          %v2930 = vpop.f32.mrb[0].mxu0
          %v2931 = vadd.f32 0.0, %v2930
          %v2932 = vpop.f32.mrb[0].mxu0
          %2933 = vmatprep.mubr.f32.mxu0 0.0
          %2934 = vmatmul.mubr.f32.gmra.mrb[0].mxu0 %v2838
          %v2935 = vpop.f32.mrb[0].mxu0
          %v2936 = vadd.f32 0.0, %v2935
          %v2937 = vpop.f32.mrb[0].mxu0
          %2938 = vmatprep.mubr.f32.mxu0 0.0
          %2939 = vmatmul.mubr.f32.gmra.mrb[0].mxu0 %v2841
          %v2940 = vpop.f32.mrb[0].mxu0
          %v2941 = vadd.f32 0.0, %v2940
          %v2942 = vpop.f32.mrb[0].mxu0
          %2943 = vmatprep.mubr.f32.mxu0 0.0
          %2944 = vmatmul.mubr.f32.gmra.mrb[0].mxu0 %v2844
          %v2945 = vpop.f32.mrb[0].mxu0
          %v2946 = vadd.f32 0.0, %v2945
          %v2947 = vpop.f32.mrb[0].mxu0
          %2948 = vmatprep.mubr.f32.mxu0 0.0
          %2949 = vmatmul.mubr.f32.gmra.mrb[0].mxu0 %v2847
          %v2950 = vpop.f32.mrb[0].mxu0
          %v2951 = vadd.f32 0.0, %v2950
          %v2952 = vpop.f32.mrb[0].mxu0
          %2953 = vmatprep.mubr.f32.mxu0 0.0
          %2954 = vmatmul.mubr.f32.gmra.mrb[0].mxu0 %v2850
          %v2955 = vpop.f32.mrb[0].mxu0
          %v2956 = vadd.f32 0.0, %v2955
          %v2957 = vpop.f32.mrb[0].mxu0
          %2958 = vmatprep.mubr.f32.mxu0 0.0
          %2959 = vmatmul.mubr.f32.gmra.mrb[0].mxu0 %v2853
          %v2960 = vpop.f32.mrb[0].mxu0
          %v2961 = vadd.f32 0.0, %v2960
          %v2962 = vpop.f32.mrb[0].mxu0
          %2963 = vdwg.mxu0
          %v2964 = vxor.u32 %v2926, 2147483648
          %v2965 = vxor.u32 %v2931, 2147483648
          %v2966 = vxor.u32 %v2936, 2147483648
          %v2967 = vxor.u32 %v2941, 2147483648
          %v2968 = vxor.u32 %v2946, 2147483648
          %v2969 = vxor.u32 %v2951, 2147483648
          %v2970 = vxor.u32 %v2956, 2147483648
          %v2971 = vxor.u32 %v2961, 2147483648
          %v2972 = vmul.f32 %v2964, 1.442695
          %v2973 = vpow.pop %v2972
          %v2974 = vmul.f32 %v2965, 1.442695
          %v2975 = vpow.pop %v2974
          %v2976 = vmul.f32 %v2966, 1.442695
          %v2977 = vpow.pop %v2976
          %v2978 = vmul.f32 %v2967, 1.442695
          %v2979 = vpow.pop %v2978
          %v2980 = vmul.f32 %v2968, 1.442695
          %v2981 = vpow.pop %v2980
          %v2982 = vmul.f32 %v2969, 1.442695
          %v2983 = vpow.pop %v2982
          %v2984 = vmul.f32 %v2970, 1.442695
          %v2985 = vpow.pop %v2984
          %v2986 = vmul.f32 %v2971, 1.442695
          %v2987 = vpow.pop %v2986
          %v2988 = vadd.f32 %v2973, 1.0
          %v2989 = vadd.f32 %v2975, 1.0
          %v2990 = vadd.f32 %v2977, 1.0
          %v2991 = vadd.f32 %v2979, 1.0
          %v2992 = vadd.f32 %v2981, 1.0
          %v2993 = vadd.f32 %v2983, 1.0
          %v2994 = vadd.f32 %v2985, 1.0
          %v2995 = vadd.f32 %v2987, 1.0
          %v2996 = vrcp.pop %v2988
          %v2997 = vmul.f32 1.0, %v2996
          %v2998 = vrcp.pop %v2989
          %v2999 = vmul.f32 1.0, %v2998
          %v3000 = vrcp.pop %v2990
          %v3001 = vmul.f32 1.0, %v3000
          %v3002 = vrcp.pop %v2991
          %v3003 = vmul.f32 1.0, %v3002
          %v3004 = vrcp.pop %v2992
          %v3005 = vmul.f32 1.0, %v3004
          %v3006 = vrcp.pop %v2993
          %v3007 = vmul.f32 1.0, %v3006
          %v3008 = vrcp.pop %v2994
          %v3009 = vmul.f32 1.0, %v3008
          %v3010 = vrcp.pop %v2995
          %v3011 = vmul.f32 1.0, %v3010
          %3012 = vst.msk [vmem:[%s472] sm:$0xff] %vm2629, %v2997
          %3013 = vst.msk [vmem:[%s472 + $0x8] sm:$0xff] %vm2629, %v2999
          %3014 = vst.msk [vmem:[%s472 + $0x10] sm:$0xff] %vm2629, %v3001
          %3015 = vst.msk [vmem:[%s472 + $0x18] sm:$0xff] %vm2629, %v3003
          %3016 = vst.msk [vmem:[%s472 + $0x20] sm:$0xff] %vm2629, %v3005
          %3017 = vst.msk [vmem:[%s472 + $0x28] sm:$0xff] %vm2629, %v3007
          %3018 = vst.msk [vmem:[%s472 + $0x30] sm:$0xff] %vm2629, %v3009
          %3019 = vst.msk [vmem:[%s472 + $0x38] sm:$0xff] %vm2629, %v3011
        $region78: #{wattention.1} parent=65 // pred_fallthru
          _
        %p3020 = scmp.lt.s32.totalorder %s18, 1
        %s3021 = scalar_select %p3020, %s18, 1
        %s3022 = smul.addr %s3021, 8
        %s3023 = smul.addr %s3022, 8
        %s3024 = scalar_lea.vmem %s3, %s3023
        // Predicated region
        $region79: #{wattention.1} parent=65 // pred_check
          %p3025 = pneg %p114
        $region80: #{wattention.1} parent=65 // pred_check_branch
          %3027 = sbr.rel (%p3025) target = $region82
        $region81: #{wattention.1} parent=65 // pred_region
          _
        $region82: #{wattention.1} parent=65 // pred_fallthru
          _
      $region66: #{wattention.1} parent=5 // pred_fallthru
        _
      %p3028 = scmp.le.s32.totalorder 2, %s9
      // Predicated region
      $region83: #{wattention.1} parent=5 // pred_check
        %p3029 = pneg %p3028
      $region84: #{wattention.1} parent=5 // pred_check_branch
        %3031 = sbr.rel (%p3029) target = $region86
      $region85: #{wattention.1} parent=5 // pred_region
        %s3032 = ssub.s32 %s9, 2
        // Predicated region
        $region87: #{wattention.1} parent=85 // pred_check
          %p3033 = pneg %p120
        $region88: #{wattention.1} parent=85 // pred_check_branch
          %3035 = sbr.rel (%p3033) target = $region90
        $region89: #{wattention.1} parent=85 // pred_region
          %p3036 = scmp.lt.s32.totalorder %s20, 1
          %s3037 = scalar_select %p3036, %s20, 1
          %s3038 = smul.addr %s3037, 8
          %s3039 = smul.addr %s3038, 8
          %s3040 = scalar_lea.vmem %s3, %s3039
        $region90: #{wattention.1} parent=85 // pred_fallthru
          _
      $region86: #{wattention.1} parent=5 // pred_fallthru
        _
    $region6: #{wattention.1} parent=1 // loop_footer
      %s13 = sadd.s32 1, %s9
    $region7: #{wattention.1} parent=1 // loop_footer_branch
      %8 = sbr.rel target = $region3
    $region8: #{wattention.1} parent=1 // loop_exit
      _

</llo_original>
